<compile_context>
chip_gen: v7x
topology: tpu7x:2x2x1
jax: 0.10.0
libtpu: 0.0.40
codegen_flags: <defaults>
</compile_context>

<pallas_src>
import math
from functools import partial

import jax
import jax.numpy as jnp
from jax.experimental import pallas as pl
from jax.experimental.pallas import tpu as pltpu


def _ln_mxu_kernel(x_ref, w_ref, b_ref, a_ref, o_ref, *, eps):
    """Packed LayerNorm: per-group mean/var via block-diagonal MXU matmul.

    x_ref: (TILE, Cp)  w_ref/b_ref: (1, Cp) f32  a_ref: (Cp, Cp) f32
    Each contiguous C-wide lane group of a row is one original row; A is
    block-diagonal with 1/C, so x @ A broadcasts each group's mean back
    across that group's lanes.  Rows never mix (A only acts on lanes), so
    garbage rows from partial blocks are harmless.
    """
    x = x_ref[...].astype(jnp.float32)
    a = a_ref[...]
    mu = jnp.dot(x, a, precision=jax.lax.Precision.HIGHEST,
                 preferred_element_type=jnp.float32)
    d = x - mu
    var = jnp.dot(d * d, a, precision=jax.lax.Precision.HIGHEST,
                  preferred_element_type=jnp.float32)          # unbiased=False
    y = d * jax.lax.rsqrt(var + eps)                           # EUP rsqrt
    o_ref[...] = (y * w_ref[...] + b_ref[...]).astype(o_ref.dtype)


def _ln_vpu_kernel(x_ref, w_ref, b_ref, o_ref, *, eps):
    """Fallback LayerNorm (g == 1, arbitrary C): plain row reduction."""
    x = x_ref[...].astype(jnp.float32)
    mu = jnp.mean(x, axis=-1, keepdims=True)
    d = x - mu
    var = jnp.mean(d * d, axis=-1, keepdims=True)              # unbiased=False
    y = d * jax.lax.rsqrt(var + eps)
    o_ref[...] = (y * w_ref[...] + b_ref[...]).astype(o_ref.dtype)


def withbias_layernorm(x, weight, bias, *, max_tile_rows=4096, eps=1e-5):
    """LayerNorm over the last axis of `x` with affine weight/bias, eps=1e-5."""
    orig_shape = x.shape
    C = orig_shape[-1]
    N = x.size // C
    dtype = x.dtype
    dtype_bytes = jnp.dtype(dtype).itemsize

    # ---- lane-dense packing: Cp = lcm(C, 128), bounded ----------------------
    g, Cp = 1, C
    if C % 128 != 0:
        lcm = (C * 128) // math.gcd(C, 128)
        if lcm <= 384:
            g, Cp = lcm // C, lcm

    x2 = x.reshape(N, C)
    pad_rows = (-N) % g
    if pad_rows:
        x2 = jnp.pad(x2, ((0, pad_rows), (0, 0)))               # at most g-1 rows
    Np = (N + pad_rows) // g
    x2 = x2.reshape(Np, Cp)

    w32 = weight.reshape(1, C).astype(jnp.float32)
    b32 = bias.reshape(1, C).astype(jnp.float32)
    if g > 1:
        w32 = jnp.tile(w32, (1, g))
        b32 = jnp.tile(b32, (1, g))

    use_mxu = (Cp % 128 == 0) and (Cp <= 384)

    # ---- row-tile sizing -----------------------------------------------------
    # Budget: double-buffered in+out tiles plus ~6x full-width f32 intermediates
    # must stay inside a conservative 24 MiB (fits v7x's 64 MiB physical VMEM
    # with room to spare; v5e/v6e have 128 MiB).
    VMEM_BUDGET = 24 * 1024 * 1024
    per_row = 4 * Cp * dtype_bytes + 6 * Cp * 4
    tile = max(16, min(max_tile_rows, VMEM_BUDGET // per_row) // 16 * 16)

    # Guarantee >=2 grid steps (>=4 for larger inputs) so the "parallel" row
    # axis shards across both v7x TensorCores and the pipeline overlaps.
    total_bytes = Np * Cp * dtype_bytes
    if total_bytes >= (4 << 20) and Np >= 64:
        tile = min(tile, max(16, (Np // 4) // 16 * 16))
    elif total_bytes >= (256 << 10) and Np >= 32:
        tile = min(tile, max(16, (Np // 2) // 16 * 16))

    # Never shrink below one 16-row block; a block may overrun Np (reads of the
    # undefined tail rows are harmless, writes there are masked).
    tile = min(tile, ((Np + 15) // 16) * 16)
    num_blocks = pl.cdiv(Np, tile)

    in_specs = [
        pl.BlockSpec((tile, Cp), lambda i: (i, 0)),
        pl.BlockSpec((1, Cp), lambda i: (0, 0)),
        pl.BlockSpec((1, Cp), lambda i: (0, 0)),
    ]
    args = [x2, w32, b32]
    if use_mxu:
        # Block-diagonal averaging matrix: A[k, l] = 1/C iff k//C == l//C.
        a_mat = jnp.kron(jnp.eye(g, dtype=jnp.float32),
                         jnp.full((C, C), 1.0 / C, dtype=jnp.float32))
        in_specs.append(pl.BlockSpec((Cp, Cp), lambda i: (0, 0)))
        args.append(a_mat)
        kernel = partial(_ln_mxu_kernel, eps=eps)
    else:
        kernel = partial(_ln_vpu_kernel, eps=eps)

    out = pl.pallas_call(
        kernel,
        out_shape=jax.ShapeDtypeStruct((Np, Cp), dtype),
        grid=(num_blocks,),
        in_specs=in_specs,
        out_specs=pl.BlockSpec((tile, Cp), lambda i: (i, 0)),
        compiler_params=pltpu.CompilerParams(
            dimension_semantics=("parallel",),        # shard rows across TCs (v7x)
            vmem_limit_bytes=40 * 1024 * 1024,        # > v5e default; < v7x physical
        ),
    )(*args)

    out = out.reshape(Np * g, C)
    if pad_rows:
        out = out[:N]
    return out.reshape(orig_shape)


def reference_layernorm(x, weight, bias, eps=1e-5):
    mu = jnp.mean(x, axis=-1, keepdims=True)
    var = jnp.mean((x - mu) ** 2, axis=-1, keepdims=True)
    return (x - mu) / jnp.sqrt(var + eps) * weight + bias


if __name__ == "__main__":
    key = jax.random.PRNGKey(0)

    # Primary case: normalized_shape = hidden = 32; input (batch, seq, hidden).
    batch, seq, hidden = 2, 8, 32
    x = jax.random.normal(key, (batch, seq, hidden), dtype=jnp.float32)
    weight = jnp.ones((hidden,), dtype=jnp.float32)   # matches torch.ones init
    bias = jnp.zeros((hidden,), dtype=jnp.float32)    # matches torch.zeros init

    out = jax.block_until_ready(withbias_layernorm(x, weight, bias))
    ref = reference_layernorm(x, weight, bias)
    assert out.shape == x.shape
    assert jnp.allclose(out, ref, atol=1e-5, rtol=1e-5), "primary case mismatch"

    k1, k2, k3, k4, k5 = jax.random.split(key, 5)

    # (a) lcm-packed path (C=48 -> Cp=384, g=8) with row padding (35 % 8 != 0).
    x_a = jax.random.normal(k1, (5, 7, 48), dtype=jnp.float32)
    w_a = jax.random.normal(k2, (48,), dtype=jnp.float32)
    b_a = jax.random.normal(k3, (48,), dtype=jnp.float32)
    out_a = jax.block_until_ready(withbias_layernorm(x_a, w_a, b_a))
    assert jnp.allclose(out_a, reference_layernorm(x_a, w_a, b_a),
                        atol=1e-5, rtol=1e-5), "lcm-packed case mismatch"

    # (b) multi-step grid with a partial last row-block (C=64 -> Cp=128, g=2).
    x_b = jax.random.normal(k4, (10, 10, 64), dtype=jnp.float32)
    w_b = jnp.full((64,), 0.5, dtype=jnp.float32)
    b_b = jnp.full((64,), 0.25, dtype=jnp.float32)
    out_b = jax.block_until_ready(
        withbias_layernorm(x_b, w_b, b_b, max_tile_rows=16))
    assert jnp.allclose(out_b, reference_layernorm(x_b, w_b, b_b),
                        atol=1e-5, rtol=1e-5), "partial-block case mismatch"

    # (c) un-packable feature dim (C=80) -> VPU fallback path.
    x_c = jax.random.normal(k5, (3, 4, 80), dtype=jnp.float32)
    w_c = jnp.ones((80,), dtype=jnp.float32)
    b_c = jnp.zeros((80,), dtype=jnp.float32)
    out_c = jax.block_until_ready(withbias_layernorm(x_c, w_c, b_c))
    assert jnp.allclose(out_c, reference_layernorm(x_c, w_c, b_c),
                        atol=1e-5, rtol=1e-5), "fallback case mismatch"

    # (d) larger input (C=128, g=1) exercising the >=2-step grid split.
    x_d = jax.random.normal(k1, (8, 512, 128), dtype=jnp.float32)
    w_d = jnp.full((128,), 1.5, dtype=jnp.float32)
    b_d = jnp.full((128,), -0.5, dtype=jnp.float32)
    out_d = jax.block_until_ready(withbias_layernorm(x_d, w_d, b_d))
    assert jnp.allclose(out_d, reference_layernorm(x_d, w_d, b_d),
                        atol=1e-5, rtol=1e-5), "multi-step case mismatch"

    print("KERNEL_OK")
</pallas_src>

<mosaic_0001>
module attributes {stable_mosaic.version = 11 : i64} {
  func.func @_ln_mxu_kernel(%arg0: i32, %arg1: memref<16x128xf32, #tpu.memory_space<vmem>>, %arg2: memref<1x128xf32, #tpu.memory_space<vmem>>, %arg3: memref<1x128xf32, #tpu.memory_space<vmem>>, %arg4: memref<128x128xf32, #tpu.memory_space<vmem>>, %arg5: memref<16x128xf32, #tpu.memory_space<vmem>>) attributes {dimension_semantics = [#tpu.dimension_semantics<parallel>], iteration_bounds = array<i64: 1>, scalar_prefetch = 0 : i64, scratch_operands = 0 : i64, tpu.core_type = #tpu.core_type<tc>, window_params = [{transform_indices = @transform_0, window_bounds = array<i64: 16, 128>}, {pipeline_mode = #tpu.pipeline_mode<synchronous>, transform_indices = @transform_1, window_bounds = array<i64: 1, 128>}, {pipeline_mode = #tpu.pipeline_mode<synchronous>, transform_indices = @transform_2, window_bounds = array<i64: 1, 128>}, {pipeline_mode = #tpu.pipeline_mode<synchronous>, transform_indices = @transform_3, window_bounds = array<i64: 128, 128>}, {transform_indices = @transform_4, window_bounds = array<i64: 16, 128>}]} {
    %c0 = arith.constant 0 : index
    %c0_0 = arith.constant 0 : index
    %0 = vector.load %arg1[%c0, %c0_0] : memref<16x128xf32, #tpu.memory_space<vmem>>, vector<16x128xf32>
    %c0_1 = arith.constant 0 : index
    %c0_2 = arith.constant 0 : index
    %1 = vector.load %arg4[%c0_1, %c0_2] : memref<128x128xf32, #tpu.memory_space<vmem>>, vector<128x128xf32>
    %cst = arith.constant dense<0.000000e+00> : vector<16x128xf32>
    %2 = tpu.matmul %0, %1, %cst {dimension_numbers = #tpu.dot_dimension_numbers<[1], [0], [0], [1], [0, 0, 1, 1], [], []>, precision = #tpu.contract_precision<fp32>} : vector<16x128xf32>, vector<128x128xf32>, vector<16x128xf32> -> vector<16x128xf32>
    %3 = arith.subf %0, %2 : vector<16x128xf32>
    %4 = arith.mulf %3, %3 : vector<16x128xf32>
    %cst_3 = arith.constant dense<0.000000e+00> : vector<16x128xf32>
    %5 = tpu.matmul %4, %1, %cst_3 {dimension_numbers = #tpu.dot_dimension_numbers<[1], [0], [0], [1], [0, 0, 1, 1], [], []>, precision = #tpu.contract_precision<fp32>} : vector<16x128xf32>, vector<128x128xf32>, vector<16x128xf32> -> vector<16x128xf32>
    %cst_4 = arith.constant 9.99999974E-6 : f32
    %6 = vector.broadcast %cst_4 : f32 to vector<16x128xf32>
    %7 = arith.addf %5, %6 : vector<16x128xf32>
    %8 = math.rsqrt %7 : vector<16x128xf32>
    %9 = arith.mulf %3, %8 : vector<16x128xf32>
    %c0_5 = arith.constant 0 : index
    %c0_6 = arith.constant 0 : index
    %10 = vector.load %arg2[%c0_5, %c0_6] : memref<1x128xf32, #tpu.memory_space<vmem>>, vector<1x128xf32>
    %11 = vector.broadcast %10 : vector<1x128xf32> to vector<16x128xf32>
    %12 = arith.mulf %9, %11 : vector<16x128xf32>
    %c0_7 = arith.constant 0 : index
    %c0_8 = arith.constant 0 : index
    %13 = vector.load %arg3[%c0_7, %c0_8] : memref<1x128xf32, #tpu.memory_space<vmem>>, vector<1x128xf32>
    %14 = vector.broadcast %13 : vector<1x128xf32> to vector<16x128xf32>
    %15 = arith.addf %12, %14 : vector<16x128xf32>
    %c0_9 = arith.constant 0 : index
    %c0_10 = arith.constant 0 : index
    %16 = vector.load %arg5[%c0_9, %c0_10] : memref<16x128xf32, #tpu.memory_space<vmem>>, vector<16x128xf32>
    tpu.vector_store %arg5[%c0_9, %c0_10], %15 {strides = array<i32>} : memref<16x128xf32, #tpu.memory_space<vmem>>, vector<16x128xf32>,
    return
  }
  func.func @transform_0(%arg0: i32) -> (i32, i32) {
    %c0_i32 = arith.constant 0 : i32
    %c0_i32_0 = arith.constant 0 : i32
    return %arg0, %c0_i32 : i32, i32
  }
  func.func @transform_1(%arg0: i32) -> (i32, i32) {
    %c0_i32 = arith.constant 0 : i32
    %c0_i32_0 = arith.constant 0 : i32
    %c0_i32_1 = arith.constant 0 : i32
    return %c0_i32, %c0_i32_0 : i32, i32
  }
  func.func @transform_2(%arg0: i32) -> (i32, i32) {
    %c0_i32 = arith.constant 0 : i32
    %c0_i32_0 = arith.constant 0 : i32
    %c0_i32_1 = arith.constant 0 : i32
    return %c0_i32, %c0_i32_0 : i32, i32
  }
  func.func @transform_3(%arg0: i32) -> (i32, i32) {
    %c0_i32 = arith.constant 0 : i32
    %c0_i32_0 = arith.constant 0 : i32
    %c0_i32_1 = arith.constant 0 : i32
    return %c0_i32, %c0_i32_0 : i32, i32
  }
  func.func @transform_4(%arg0: i32) -> (i32, i32) {
    %c0_i32 = arith.constant 0 : i32
    %c0_i32_0 = arith.constant 0 : i32
    return %arg0, %c0_i32 : i32, i32
  }
}

</mosaic_0001>

<llo_original>
// kernel: tpu_custom_call.1
$region0: #{tpu_custom_call.1}
  #allocation0 [shape = 'u32[]', space=smem, size = 0x4, offset = 0x4, fixed_abs, tag = 'smem constant byte address 0x4 - core index']
  #allocation1 [shape = 'u32[144,128]{1,0:T(1,128)}', space=vmem, size = 0x12000, scoped, tag = 'internal scratch']
  %s0 = inlined_call_operand.hbm [shape: f32[4,128], index: 0, kind: input, shape index: {}]
  %s1 = inlined_call_operand.vmem [shape: f32[1,128], index: 1, kind: input, shape index: {}]
  %s2 = inlined_call_operand.vmem [shape: f32[1,128], index: 2, kind: input, shape index: {}]
  %s3 = inlined_call_operand.hbm [shape: f32[128,128], index: 3, kind: input, shape index: {}]
  %s4 = inlined_call_operand.hbm [shape: f32[4,128], index: 4, kind: output, shape index: {}]
  %s5 = sld [smem:[#allocation0]]
  $region34: #{tpu_custom_call.1} parent=0
    _
  %s7 = ssub.s32 1, %s5
  %s8 = scalar_select 0, %s7, %s5
  $region1: #{tpu_custom_call.1} parent=0
    #allocation2 [shape = 'u8[8192]{0}', space=vmem, size = 0x2000, scoped, tag = 'input window, operand 0, single buffered']
    #allocation3 [shape = 's32[1]{0}', space=sflag, size = 0x4, scoped, tag = 'scoped memory for tpu_custom_call.1']
    #allocation4 [shape = 's32[1]{0}', space=sflag, size = 0x4, scoped, tag = 'scoped memory for tpu_custom_call.1']
    #allocation5 [shape = 'u8[65536]{0}', space=vmem, size = 0x10000, scoped, tag = 'input window, operand 3, single buffered']
    #allocation6 [shape = 's32[1]{0}', space=sflag, size = 0x4, scoped, tag = 'scoped memory for tpu_custom_call.1']
    #allocation7 [shape = 'u8[8192]{0}', space=vmem, size = 0x2000, scoped, tag = 'output window, operand 0, single buffered']
    %9 = vsyncpa [#allocation3], 0
    %10 = vsyncpa [#allocation6], 0
    %11 = vsyncpa [#allocation4], 0
    // Predicated region
    $region2: #{tpu_custom_call.1} parent=1 // pred_check
      _
    $region3: #{tpu_custom_call.1} parent=1 // pred_check_branch
      %13 = sbr.rel (0) target = $region5
    $region4: #{tpu_custom_call.1} parent=1 // pred_region
      %s15 = ssub.s32 256, 64
      %16 = vsyncadd [#allocation3], %s15
      %s17 = sshll.u32 [#allocation2], 4
      %s18 = int_to_ptr.vmem [resolvable:$true] %s17
      %23 = dma.hbm_to_vmem [thread:$0]  %s0, 64, %s18, [#allocation3], 64, 64, 4
    $region5: #{tpu_custom_call.1} parent=1 // pred_fallthru
      _
    // Predicated region
    $region6: #{tpu_custom_call.1} parent=1 // pred_check
      _
    $region7: #{tpu_custom_call.1} parent=1 // pred_check_branch
      %25 = sbr.rel (0) target = $region9
    $region8: #{tpu_custom_call.1} parent=1 // pred_region
      _
    $region9: #{tpu_custom_call.1} parent=1 // pred_fallthru
      _
    // Predicated region
    $region10: #{tpu_custom_call.1} parent=1 // pred_check
      _
    $region11: #{tpu_custom_call.1} parent=1 // pred_check_branch
      %27 = sbr.rel (0) target = $region13
    $region12: #{tpu_custom_call.1} parent=1 // pred_region
      _
    $region13: #{tpu_custom_call.1} parent=1 // pred_fallthru
      _
    // Predicated region
    $region14: #{tpu_custom_call.1} parent=1 // pred_check
      _
    $region15: #{tpu_custom_call.1} parent=1 // pred_check_branch
      %29 = sbr.rel (0) target = $region17
    $region16: #{tpu_custom_call.1} parent=1 // pred_region
      %s31 = ssub.s32 2048, 2048
      %32 = vsyncadd [#allocation6], %s31
      %s33 = sshll.u32 [#allocation5], 4
      %s34 = int_to_ptr.vmem [resolvable:$true] %s33
      %39 = dma.hbm_to_vmem [thread:$0]  %s3, 2048, %s34, [#allocation6], 128, 128, 8
    $region17: #{tpu_custom_call.1} parent=1 // pred_fallthru
      _
    // Predicated region
    $region18: #{tpu_custom_call.1} parent=1 // pred_check
      _
    $region19: #{tpu_custom_call.1} parent=1 // pred_check_branch
      %41 = sbr.rel (0) target = $region21
    $region20: #{tpu_custom_call.1} parent=1 // pred_region
      %42 = dma.done [#allocation3], 256
    $region21: #{tpu_custom_call.1} parent=1 // pred_fallthru
      _
    // Predicated region
    $region22: #{tpu_custom_call.1} parent=1 // pred_check
      _
    $region23: #{tpu_custom_call.1} parent=1 // pred_check_branch
      %44 = sbr.rel (0) target = $region25
    $region24: #{tpu_custom_call.1} parent=1 // pred_region
      %45 = dma.done [#allocation6], 2048
    $region25: #{tpu_custom_call.1} parent=1 // pred_fallthru
      _
    %v46 = vld [vmem:[#allocation2] sm:$0xff]
    %v47 = vld [vmem:[#allocation2 + $0x8] sm:$0xff]
    %v48 = vld [vmem:[#allocation5] sm:$0xff]
    %v49 = vld [vmem:[#allocation5 + $0x8] sm:$0xff]
    %v50 = vld [vmem:[#allocation5 + $0x10] sm:$0xff]
    %v51 = vld [vmem:[#allocation5 + $0x18] sm:$0xff]
    %v52 = vld [vmem:[#allocation5 + $0x20] sm:$0xff]
    %v53 = vld [vmem:[#allocation5 + $0x28] sm:$0xff]
    %v54 = vld [vmem:[#allocation5 + $0x30] sm:$0xff]
    %v55 = vld [vmem:[#allocation5 + $0x38] sm:$0xff]
    %v56 = vld [vmem:[#allocation5 + $0x40] sm:$0xff]
    %v57 = vld [vmem:[#allocation5 + $0x48] sm:$0xff]
    %v58 = vld [vmem:[#allocation5 + $0x50] sm:$0xff]
    %v59 = vld [vmem:[#allocation5 + $0x58] sm:$0xff]
    %v60 = vld [vmem:[#allocation5 + $0x60] sm:$0xff]
    %v61 = vld [vmem:[#allocation5 + $0x68] sm:$0xff]
    %v62 = vld [vmem:[#allocation5 + $0x70] sm:$0xff]
    %v63 = vld [vmem:[#allocation5 + $0x78] sm:$0xff]
    %64 = vmatprep.subr.mxu0 0.0
    %v65 = vand.u32 %v48, 4294901760
    %66 = vmatpush1.msra.mxu0 %v65
    %67 = vmatprep.subr.mxu0 0.0
    %v68 = vand.u32 %v49, 4294901760
    %69 = vmatpush1.msra.mxu0 %v68
    %70 = vmatprep.subr.mxu0 0.0
    %v71 = vand.u32 %v50, 4294901760
    %72 = vmatpush1.msra.mxu0 %v71
    %73 = vmatprep.subr.mxu0 0.0
    %v74 = vand.u32 %v51, 4294901760
    %75 = vmatpush1.msra.mxu0 %v74
    %76 = vmatprep.subr.mxu0 0.0
    %v77 = vand.u32 %v52, 4294901760
    %78 = vmatpush1.msra.mxu0 %v77
    %79 = vmatprep.subr.mxu0 0.0
    %v80 = vand.u32 %v53, 4294901760
    %81 = vmatpush1.msra.mxu0 %v80
    %82 = vmatprep.subr.mxu0 0.0
    %v83 = vand.u32 %v54, 4294901760
    %84 = vmatpush1.msra.mxu0 %v83
    %85 = vmatprep.subr.mxu0 0.0
    %v86 = vand.u32 %v55, 4294901760
    %87 = vmatpush1.msra.mxu0 %v86
    %88 = vmatprep.subr.mxu0 0.0
    %v89 = vand.u32 %v56, 4294901760
    %90 = vmatpush1.msra.mxu0 %v89
    %91 = vmatprep.subr.mxu0 0.0
    %v92 = vand.u32 %v57, 4294901760
    %93 = vmatpush1.msra.mxu0 %v92
    %94 = vmatprep.subr.mxu0 0.0
    %v95 = vand.u32 %v58, 4294901760
    %96 = vmatpush1.msra.mxu0 %v95
    %97 = vmatprep.subr.mxu0 0.0
    %v98 = vand.u32 %v59, 4294901760
    %99 = vmatpush1.msra.mxu0 %v98
    %100 = vmatprep.subr.mxu0 0.0
    %v101 = vand.u32 %v60, 4294901760
    %102 = vmatpush1.msra.mxu0 %v101
    %103 = vmatprep.subr.mxu0 0.0
    %v104 = vand.u32 %v61, 4294901760
    %105 = vmatpush1.msra.mxu0 %v104
    %106 = vmatprep.subr.mxu0 0.0
    %v107 = vand.u32 %v62, 4294901760
    %108 = vmatpush1.msra.mxu0 %v107
    %109 = vmatprep.subr.mxu0 0.0
    %v110 = vand.u32 %v63, 4294901760
    %111 = vmatpush1.msra.mxu0 %v110
    %112 = vmatprep.subr.mxu0 0.0
    %113 = vmatpush1.msra.mxu0 0.0
    %114 = vmatprep.subr.mxu0 0.0
    %115 = vmatpush1.msra.mxu0 0.0
    %116 = vmatprep.subr.mxu0 0.0
    %117 = vmatpush1.msra.mxu0 0.0
    %118 = vmatprep.subr.mxu0 0.0
    %119 = vmatpush1.msra.mxu0 0.0
    %120 = vmatprep.subr.mxu0 0.0
    %121 = vmatpush1.msra.mxu0 0.0
    %122 = vmatprep.subr.mxu0 0.0
    %123 = vmatpush1.msra.mxu0 0.0
    %124 = vmatprep.subr.mxu0 0.0
    %125 = vmatpush1.msra.mxu0 0.0
    %126 = vmatprep.subr.mxu0 0.0
    %127 = vmatpush1.msra.mxu0 0.0
    %128 = vmatprep.subr.mxu0 0.0
    %129 = vmatpush1.msra.mxu0 0.0
    %130 = vmatprep.subr.mxu0 0.0
    %131 = vmatpush1.msra.mxu0 0.0
    %132 = vmatprep.subr.mxu0 0.0
    %133 = vmatpush1.msra.mxu0 0.0
    %134 = vmatprep.subr.mxu0 0.0
    %135 = vmatpush1.msra.mxu0 0.0
    %136 = vmatprep.subr.mxu0 0.0
    %137 = vmatpush1.msra.mxu0 0.0
    %138 = vmatprep.subr.mxu0 0.0
    %139 = vmatpush1.msra.mxu0 0.0
    %140 = vmatprep.subr.mxu0 0.0
    %141 = vmatpush1.msra.mxu0 0.0
    %142 = vmatprep.subr.mxu0 0.0
    %143 = vmatpush1.msra.mxu0 0.0
    %144 = vmatprep.mubr.f32.mxu0 0.0
    %v145 = vand.u32 %v46, 4294901760
    %v146 = vsub.f32 %v46, %v145
    %v147 = vand.u32 %v146, 4294901760
    %v148 = vsub.f32 %v146, %v147
    %v149 = vand.u32 %v148, 4294901760
    %150 = vmatmul.mubr.f32.gmra.mrb[0].mxu0 %v149
    %v151 = vpop.f32.mrb[0].mxu0
    %v152 = vadd.f32 0.0, %v151
    %v153 = vpop.f32.mrb[0].mxu0
    %154 = vmatprep.mubr.f32.mxu0 0.0
    %v155 = vand.u32 %v47, 4294901760
    %v156 = vsub.f32 %v47, %v155
    %v157 = vand.u32 %v156, 4294901760
    %v158 = vsub.f32 %v156, %v157
    %v159 = vand.u32 %v158, 4294901760
    %160 = vmatmul.mubr.f32.gmra.mrb[0].mxu0 %v159
    %v161 = vpop.f32.mrb[0].mxu0
    %v162 = vadd.f32 0.0, %v161
    %v163 = vpop.f32.mrb[0].mxu0
    %164 = vdwg.mxu0
    %165 = vmatprep.subr.mxu0 0.0
    %v166 = vand.u32 %v48, 4294901760
    %v167 = vsub.f32 %v48, %v166
    %v168 = vand.u32 %v167, 4294901760
    %v169 = vsub.f32 %v167, %v168
    %v170 = vand.u32 %v169, 4294901760
    %171 = vmatpush1.msra.mxu0 %v170
    %172 = vmatprep.subr.mxu0 0.0
    %v173 = vand.u32 %v49, 4294901760
    %v174 = vsub.f32 %v49, %v173
    %v175 = vand.u32 %v174, 4294901760
    %v176 = vsub.f32 %v174, %v175
    %v177 = vand.u32 %v176, 4294901760
    %178 = vmatpush1.msra.mxu0 %v177
    %179 = vmatprep.subr.mxu0 0.0
    %v180 = vand.u32 %v50, 4294901760
    %v181 = vsub.f32 %v50, %v180
    %v182 = vand.u32 %v181, 4294901760
    %v183 = vsub.f32 %v181, %v182
    %v184 = vand.u32 %v183, 4294901760
    %185 = vmatpush1.msra.mxu0 %v184
    %186 = vmatprep.subr.mxu0 0.0
    %v187 = vand.u32 %v51, 4294901760
    %v188 = vsub.f32 %v51, %v187
    %v189 = vand.u32 %v188, 4294901760
    %v190 = vsub.f32 %v188, %v189
    %v191 = vand.u32 %v190, 4294901760
    %192 = vmatpush1.msra.mxu0 %v191
    %193 = vmatprep.subr.mxu0 0.0
    %v194 = vand.u32 %v52, 4294901760
    %v195 = vsub.f32 %v52, %v194
    %v196 = vand.u32 %v195, 4294901760
    %v197 = vsub.f32 %v195, %v196
    %v198 = vand.u32 %v197, 4294901760
    %199 = vmatpush1.msra.mxu0 %v198
    %200 = vmatprep.subr.mxu0 0.0
    %v201 = vand.u32 %v53, 4294901760
    %v202 = vsub.f32 %v53, %v201
    %v203 = vand.u32 %v202, 4294901760
    %v204 = vsub.f32 %v202, %v203
    %v205 = vand.u32 %v204, 4294901760
    %206 = vmatpush1.msra.mxu0 %v205
    %207 = vmatprep.subr.mxu0 0.0
    %v208 = vand.u32 %v54, 4294901760
    %v209 = vsub.f32 %v54, %v208
    %v210 = vand.u32 %v209, 4294901760
    %v211 = vsub.f32 %v209, %v210
    %v212 = vand.u32 %v211, 4294901760
    %213 = vmatpush1.msra.mxu0 %v212
    %214 = vmatprep.subr.mxu0 0.0
    %v215 = vand.u32 %v55, 4294901760
    %v216 = vsub.f32 %v55, %v215
    %v217 = vand.u32 %v216, 4294901760
    %v218 = vsub.f32 %v216, %v217
    %v219 = vand.u32 %v218, 4294901760
    %220 = vmatpush1.msra.mxu0 %v219
    %221 = vmatprep.subr.mxu0 0.0
    %v222 = vand.u32 %v56, 4294901760
    %v223 = vsub.f32 %v56, %v222
    %v224 = vand.u32 %v223, 4294901760
    %v225 = vsub.f32 %v223, %v224
    %v226 = vand.u32 %v225, 4294901760
    %227 = vmatpush1.msra.mxu0 %v226
    %228 = vmatprep.subr.mxu0 0.0
    %v229 = vand.u32 %v57, 4294901760
    %v230 = vsub.f32 %v57, %v229
    %v231 = vand.u32 %v230, 4294901760
    %v232 = vsub.f32 %v230, %v231
    %v233 = vand.u32 %v232, 4294901760
    %234 = vmatpush1.msra.mxu0 %v233
    %235 = vmatprep.subr.mxu0 0.0
    %v236 = vand.u32 %v58, 4294901760
    %v237 = vsub.f32 %v58, %v236
    %v238 = vand.u32 %v237, 4294901760
    %v239 = vsub.f32 %v237, %v238
    %v240 = vand.u32 %v239, 4294901760
    %241 = vmatpush1.msra.mxu0 %v240
    %242 = vmatprep.subr.mxu0 0.0
    %v243 = vand.u32 %v59, 4294901760
    %v244 = vsub.f32 %v59, %v243
    %v245 = vand.u32 %v244, 4294901760
    %v246 = vsub.f32 %v244, %v245
    %v247 = vand.u32 %v246, 4294901760
    %248 = vmatpush1.msra.mxu0 %v247
    %249 = vmatprep.subr.mxu0 0.0
    %v250 = vand.u32 %v60, 4294901760
    %v251 = vsub.f32 %v60, %v250
    %v252 = vand.u32 %v251, 4294901760
    %v253 = vsub.f32 %v251, %v252
    %v254 = vand.u32 %v253, 4294901760
    %255 = vmatpush1.msra.mxu0 %v254
    %256 = vmatprep.subr.mxu0 0.0
    %v257 = vand.u32 %v61, 4294901760
    %v258 = vsub.f32 %v61, %v257
    %v259 = vand.u32 %v258, 4294901760
    %v260 = vsub.f32 %v258, %v259
    %v261 = vand.u32 %v260, 4294901760
    %262 = vmatpush1.msra.mxu0 %v261
    %263 = vmatprep.subr.mxu0 0.0
    %v264 = vand.u32 %v62, 4294901760
    %v265 = vsub.f32 %v62, %v264
    %v266 = vand.u32 %v265, 4294901760
    %v267 = vsub.f32 %v265, %v266
    %v268 = vand.u32 %v267, 4294901760
    %269 = vmatpush1.msra.mxu0 %v268
    %270 = vmatprep.subr.mxu0 0.0
    %v271 = vand.u32 %v63, 4294901760
    %v272 = vsub.f32 %v63, %v271
    %v273 = vand.u32 %v272, 4294901760
    %v274 = vsub.f32 %v272, %v273
    %v275 = vand.u32 %v274, 4294901760
    %276 = vmatpush1.msra.mxu0 %v275
    %277 = vmatprep.subr.mxu0 0.0
    %278 = vmatpush1.msra.mxu0 0.0
    %279 = vmatprep.subr.mxu0 0.0
    %280 = vmatpush1.msra.mxu0 0.0
    %281 = vmatprep.subr.mxu0 0.0
    %282 = vmatpush1.msra.mxu0 0.0
    %283 = vmatprep.subr.mxu0 0.0
    %284 = vmatpush1.msra.mxu0 0.0
    %285 = vmatprep.subr.mxu0 0.0
    %286 = vmatpush1.msra.mxu0 0.0
    %287 = vmatprep.subr.mxu0 0.0
    %288 = vmatpush1.msra.mxu0 0.0
    %289 = vmatprep.subr.mxu0 0.0
    %290 = vmatpush1.msra.mxu0 0.0
    %291 = vmatprep.subr.mxu0 0.0
    %292 = vmatpush1.msra.mxu0 0.0
    %293 = vmatprep.subr.mxu0 0.0
    %294 = vmatpush1.msra.mxu0 0.0
    %295 = vmatprep.subr.mxu0 0.0
    %296 = vmatpush1.msra.mxu0 0.0
    %297 = vmatprep.subr.mxu0 0.0
    %298 = vmatpush1.msra.mxu0 0.0
    %299 = vmatprep.subr.mxu0 0.0
    %300 = vmatpush1.msra.mxu0 0.0
    %301 = vmatprep.subr.mxu0 0.0
    %302 = vmatpush1.msra.mxu0 0.0
    %303 = vmatprep.subr.mxu0 0.0
    %304 = vmatpush1.msra.mxu0 0.0
    %305 = vmatprep.subr.mxu0 0.0
    %306 = vmatpush1.msra.mxu0 0.0
    %307 = vmatprep.subr.mxu0 0.0
    %308 = vmatpush1.msra.mxu0 0.0
    %309 = vmatprep.mubr.f32.mxu0 0.0
    %v310 = vand.u32 %v46, 4294901760
    %311 = vmatmul.mubr.f32.gmra.mrb[0].mxu0 %v310
    %v312 = vpop.f32.mrb[0].mxu0
    %v313 = vadd.f32 %v152, %v312
    %v314 = vpop.f32.mrb[0].mxu0
    %315 = vmatprep.mubr.f32.mxu0 0.0
    %v316 = vand.u32 %v47, 4294901760
    %317 = vmatmul.mubr.f32.gmra.mrb[0].mxu0 %v316
    %v318 = vpop.f32.mrb[0].mxu0
    %v319 = vadd.f32 %v162, %v318
    %v320 = vpop.f32.mrb[0].mxu0
    %321 = vdwg.mxu0
    %322 = vmatprep.subr.mxu0 0.0
    %v323 = vand.u32 %v48, 4294901760
    %v324 = vsub.f32 %v48, %v323
    %325 = vmatpush1.msra.mxu0 %v324
    %326 = vmatprep.subr.mxu0 0.0
    %v327 = vand.u32 %v49, 4294901760
    %v328 = vsub.f32 %v49, %v327
    %329 = vmatpush1.msra.mxu0 %v328
    %330 = vmatprep.subr.mxu0 0.0
    %v331 = vand.u32 %v50, 4294901760
    %v332 = vsub.f32 %v50, %v331
    %333 = vmatpush1.msra.mxu0 %v332
    %334 = vmatprep.subr.mxu0 0.0
    %v335 = vand.u32 %v51, 4294901760
    %v336 = vsub.f32 %v51, %v335
    %337 = vmatpush1.msra.mxu0 %v336
    %338 = vmatprep.subr.mxu0 0.0
    %v339 = vand.u32 %v52, 4294901760
    %v340 = vsub.f32 %v52, %v339
    %341 = vmatpush1.msra.mxu0 %v340
    %342 = vmatprep.subr.mxu0 0.0
    %v343 = vand.u32 %v53, 4294901760
    %v344 = vsub.f32 %v53, %v343
    %345 = vmatpush1.msra.mxu0 %v344
    %346 = vmatprep.subr.mxu0 0.0
    %v347 = vand.u32 %v54, 4294901760
    %v348 = vsub.f32 %v54, %v347
    %349 = vmatpush1.msra.mxu0 %v348
    %350 = vmatprep.subr.mxu0 0.0
    %v351 = vand.u32 %v55, 4294901760
    %v352 = vsub.f32 %v55, %v351
    %353 = vmatpush1.msra.mxu0 %v352
    %354 = vmatprep.subr.mxu0 0.0
    %v355 = vand.u32 %v56, 4294901760
    %v356 = vsub.f32 %v56, %v355
    %357 = vmatpush1.msra.mxu0 %v356
    %358 = vmatprep.subr.mxu0 0.0
    %v359 = vand.u32 %v57, 4294901760
    %v360 = vsub.f32 %v57, %v359
    %361 = vmatpush1.msra.mxu0 %v360
    %362 = vmatprep.subr.mxu0 0.0
    %v363 = vand.u32 %v58, 4294901760
    %v364 = vsub.f32 %v58, %v363
    %365 = vmatpush1.msra.mxu0 %v364
    %366 = vmatprep.subr.mxu0 0.0
    %v367 = vand.u32 %v59, 4294901760
    %v368 = vsub.f32 %v59, %v367
    %369 = vmatpush1.msra.mxu0 %v368
    %370 = vmatprep.subr.mxu0 0.0
    %v371 = vand.u32 %v60, 4294901760
    %v372 = vsub.f32 %v60, %v371
    %373 = vmatpush1.msra.mxu0 %v372
    %374 = vmatprep.subr.mxu0 0.0
    %v375 = vand.u32 %v61, 4294901760
    %v376 = vsub.f32 %v61, %v375
    %377 = vmatpush1.msra.mxu0 %v376
    %378 = vmatprep.subr.mxu0 0.0
    %v379 = vand.u32 %v62, 4294901760
    %v380 = vsub.f32 %v62, %v379
    %381 = vmatpush1.msra.mxu0 %v380
    %382 = vmatprep.subr.mxu0 0.0
    %v383 = vand.u32 %v63, 4294901760
    %v384 = vsub.f32 %v63, %v383
    %385 = vmatpush1.msra.mxu0 %v384
    %386 = vmatprep.subr.mxu0 0.0
    %387 = vmatpush1.msra.mxu0 0.0
    %388 = vmatprep.subr.mxu0 0.0
    %389 = vmatpush1.msra.mxu0 0.0
    %390 = vmatprep.subr.mxu0 0.0
    %391 = vmatpush1.msra.mxu0 0.0
    %392 = vmatprep.subr.mxu0 0.0
    %393 = vmatpush1.msra.mxu0 0.0
    %394 = vmatprep.subr.mxu0 0.0
    %395 = vmatpush1.msra.mxu0 0.0
    %396 = vmatprep.subr.mxu0 0.0
    %397 = vmatpush1.msra.mxu0 0.0
    %398 = vmatprep.subr.mxu0 0.0
    %399 = vmatpush1.msra.mxu0 0.0
    %400 = vmatprep.subr.mxu0 0.0
    %401 = vmatpush1.msra.mxu0 0.0
    %402 = vmatprep.subr.mxu0 0.0
    %403 = vmatpush1.msra.mxu0 0.0
    %404 = vmatprep.subr.mxu0 0.0
    %405 = vmatpush1.msra.mxu0 0.0
    %406 = vmatprep.subr.mxu0 0.0
    %407 = vmatpush1.msra.mxu0 0.0
    %408 = vmatprep.subr.mxu0 0.0
    %409 = vmatpush1.msra.mxu0 0.0
    %410 = vmatprep.subr.mxu0 0.0
    %411 = vmatpush1.msra.mxu0 0.0
    %412 = vmatprep.subr.mxu0 0.0
    %413 = vmatpush1.msra.mxu0 0.0
    %414 = vmatprep.subr.mxu0 0.0
    %415 = vmatpush1.msra.mxu0 0.0
    %416 = vmatprep.subr.mxu0 0.0
    %417 = vmatpush1.msra.mxu0 0.0
    %418 = vmatprep.mubr.f32.mxu0 0.0
    %v419 = vand.u32 %v46, 4294901760
    %v420 = vsub.f32 %v46, %v419
    %421 = vmatmul.mubr.f32.gmra.mrb[0].mxu0 %v420
    %v422 = vpop.f32.mrb[0].mxu0
    %v423 = vadd.f32 %v313, %v422
    %v424 = vpop.f32.mrb[0].mxu0
    %425 = vmatprep.mubr.f32.mxu0 0.0
    %v426 = vand.u32 %v47, 4294901760
    %v427 = vsub.f32 %v47, %v426
    %428 = vmatmul.mubr.f32.gmra.mrb[0].mxu0 %v427
    %v429 = vpop.f32.mrb[0].mxu0
    %v430 = vadd.f32 %v319, %v429
    %v431 = vpop.f32.mrb[0].mxu0
    %432 = vdwg.mxu0
    %433 = vmatprep.subr.mxu0 0.0
    %v434 = vand.u32 %v48, 4294901760
    %435 = vmatpush1.msra.mxu0 %v434
    %436 = vmatprep.subr.mxu0 0.0
    %v437 = vand.u32 %v49, 4294901760
    %438 = vmatpush1.msra.mxu0 %v437
    %439 = vmatprep.subr.mxu0 0.0
    %v440 = vand.u32 %v50, 4294901760
    %441 = vmatpush1.msra.mxu0 %v440
    %442 = vmatprep.subr.mxu0 0.0
    %v443 = vand.u32 %v51, 4294901760
    %444 = vmatpush1.msra.mxu0 %v443
    %445 = vmatprep.subr.mxu0 0.0
    %v446 = vand.u32 %v52, 4294901760
    %447 = vmatpush1.msra.mxu0 %v446
    %448 = vmatprep.subr.mxu0 0.0
    %v449 = vand.u32 %v53, 4294901760
    %450 = vmatpush1.msra.mxu0 %v449
    %451 = vmatprep.subr.mxu0 0.0
    %v452 = vand.u32 %v54, 4294901760
    %453 = vmatpush1.msra.mxu0 %v452
    %454 = vmatprep.subr.mxu0 0.0
    %v455 = vand.u32 %v55, 4294901760
    %456 = vmatpush1.msra.mxu0 %v455
    %457 = vmatprep.subr.mxu0 0.0
    %v458 = vand.u32 %v56, 4294901760
    %459 = vmatpush1.msra.mxu0 %v458
    %460 = vmatprep.subr.mxu0 0.0
    %v461 = vand.u32 %v57, 4294901760
    %462 = vmatpush1.msra.mxu0 %v461
    %463 = vmatprep.subr.mxu0 0.0
    %v464 = vand.u32 %v58, 4294901760
    %465 = vmatpush1.msra.mxu0 %v464
    %466 = vmatprep.subr.mxu0 0.0
    %v467 = vand.u32 %v59, 4294901760
    %468 = vmatpush1.msra.mxu0 %v467
    %469 = vmatprep.subr.mxu0 0.0
    %v470 = vand.u32 %v60, 4294901760
    %471 = vmatpush1.msra.mxu0 %v470
    %472 = vmatprep.subr.mxu0 0.0
    %v473 = vand.u32 %v61, 4294901760
    %474 = vmatpush1.msra.mxu0 %v473
    %475 = vmatprep.subr.mxu0 0.0
    %v476 = vand.u32 %v62, 4294901760
    %477 = vmatpush1.msra.mxu0 %v476
    %478 = vmatprep.subr.mxu0 0.0
    %v479 = vand.u32 %v63, 4294901760
    %480 = vmatpush1.msra.mxu0 %v479
    %481 = vmatprep.subr.mxu0 0.0
    %482 = vmatpush1.msra.mxu0 0.0
    %483 = vmatprep.subr.mxu0 0.0
    %484 = vmatpush1.msra.mxu0 0.0
    %485 = vmatprep.subr.mxu0 0.0
    %486 = vmatpush1.msra.mxu0 0.0
    %487 = vmatprep.subr.mxu0 0.0
    %488 = vmatpush1.msra.mxu0 0.0
    %489 = vmatprep.subr.mxu0 0.0
    %490 = vmatpush1.msra.mxu0 0.0
    %491 = vmatprep.subr.mxu0 0.0
    %492 = vmatpush1.msra.mxu0 0.0
    %493 = vmatprep.subr.mxu0 0.0
    %494 = vmatpush1.msra.mxu0 0.0
    %495 = vmatprep.subr.mxu0 0.0
    %496 = vmatpush1.msra.mxu0 0.0
    %497 = vmatprep.subr.mxu0 0.0
    %498 = vmatpush1.msra.mxu0 0.0
    %499 = vmatprep.subr.mxu0 0.0
    %500 = vmatpush1.msra.mxu0 0.0
    %501 = vmatprep.subr.mxu0 0.0
    %502 = vmatpush1.msra.mxu0 0.0
    %503 = vmatprep.subr.mxu0 0.0
    %504 = vmatpush1.msra.mxu0 0.0
    %505 = vmatprep.subr.mxu0 0.0
    %506 = vmatpush1.msra.mxu0 0.0
    %507 = vmatprep.subr.mxu0 0.0
    %508 = vmatpush1.msra.mxu0 0.0
    %509 = vmatprep.subr.mxu0 0.0
    %510 = vmatpush1.msra.mxu0 0.0
    %511 = vmatprep.subr.mxu0 0.0
    %512 = vmatpush1.msra.mxu0 0.0
    %513 = vmatprep.mubr.f32.mxu0 0.0
    %v514 = vand.u32 %v46, 4294901760
    %v515 = vsub.f32 %v46, %v514
    %v516 = vand.u32 %v515, 4294901760
    %517 = vmatmul.mubr.f32.gmra.mrb[0].mxu0 %v516
    %v518 = vpop.f32.mrb[0].mxu0
    %v519 = vadd.f32 %v423, %v518
    %v520 = vpop.f32.mrb[0].mxu0
    %521 = vmatprep.mubr.f32.mxu0 0.0
    %v522 = vand.u32 %v47, 4294901760
    %v523 = vsub.f32 %v47, %v522
    %v524 = vand.u32 %v523, 4294901760
    %525 = vmatmul.mubr.f32.gmra.mrb[0].mxu0 %v524
    %v526 = vpop.f32.mrb[0].mxu0
    %v527 = vadd.f32 %v430, %v526
    %v528 = vpop.f32.mrb[0].mxu0
    %529 = vdwg.mxu0
    %530 = vmatprep.subr.mxu0 0.0
    %v531 = vand.u32 %v48, 4294901760
    %v532 = vsub.f32 %v48, %v531
    %v533 = vand.u32 %v532, 4294901760
    %534 = vmatpush1.msra.mxu0 %v533
    %535 = vmatprep.subr.mxu0 0.0
    %v536 = vand.u32 %v49, 4294901760
    %v537 = vsub.f32 %v49, %v536
    %v538 = vand.u32 %v537, 4294901760
    %539 = vmatpush1.msra.mxu0 %v538
    %540 = vmatprep.subr.mxu0 0.0
    %v541 = vand.u32 %v50, 4294901760
    %v542 = vsub.f32 %v50, %v541
    %v543 = vand.u32 %v542, 4294901760
    %544 = vmatpush1.msra.mxu0 %v543
    %545 = vmatprep.subr.mxu0 0.0
    %v546 = vand.u32 %v51, 4294901760
    %v547 = vsub.f32 %v51, %v546
    %v548 = vand.u32 %v547, 4294901760
    %549 = vmatpush1.msra.mxu0 %v548
    %550 = vmatprep.subr.mxu0 0.0
    %v551 = vand.u32 %v52, 4294901760
    %v552 = vsub.f32 %v52, %v551
    %v553 = vand.u32 %v552, 4294901760
    %554 = vmatpush1.msra.mxu0 %v553
    %555 = vmatprep.subr.mxu0 0.0
    %v556 = vand.u32 %v53, 4294901760
    %v557 = vsub.f32 %v53, %v556
    %v558 = vand.u32 %v557, 4294901760
    %559 = vmatpush1.msra.mxu0 %v558
    %560 = vmatprep.subr.mxu0 0.0
    %v561 = vand.u32 %v54, 4294901760
    %v562 = vsub.f32 %v54, %v561
    %v563 = vand.u32 %v562, 4294901760
    %564 = vmatpush1.msra.mxu0 %v563
    %565 = vmatprep.subr.mxu0 0.0
    %v566 = vand.u32 %v55, 4294901760
    %v567 = vsub.f32 %v55, %v566
    %v568 = vand.u32 %v567, 4294901760
    %569 = vmatpush1.msra.mxu0 %v568
    %570 = vmatprep.subr.mxu0 0.0
    %v571 = vand.u32 %v56, 4294901760
    %v572 = vsub.f32 %v56, %v571
    %v573 = vand.u32 %v572, 4294901760
    %574 = vmatpush1.msra.mxu0 %v573
    %575 = vmatprep.subr.mxu0 0.0
    %v576 = vand.u32 %v57, 4294901760
    %v577 = vsub.f32 %v57, %v576
    %v578 = vand.u32 %v577, 4294901760
    %579 = vmatpush1.msra.mxu0 %v578
    %580 = vmatprep.subr.mxu0 0.0
    %v581 = vand.u32 %v58, 4294901760
    %v582 = vsub.f32 %v58, %v581
    %v583 = vand.u32 %v582, 4294901760
    %584 = vmatpush1.msra.mxu0 %v583
    %585 = vmatprep.subr.mxu0 0.0
    %v586 = vand.u32 %v59, 4294901760
    %v587 = vsub.f32 %v59, %v586
    %v588 = vand.u32 %v587, 4294901760
    %589 = vmatpush1.msra.mxu0 %v588
    %590 = vmatprep.subr.mxu0 0.0
    %v591 = vand.u32 %v60, 4294901760
    %v592 = vsub.f32 %v60, %v591
    %v593 = vand.u32 %v592, 4294901760
    %594 = vmatpush1.msra.mxu0 %v593
    %595 = vmatprep.subr.mxu0 0.0
    %v596 = vand.u32 %v61, 4294901760
    %v597 = vsub.f32 %v61, %v596
    %v598 = vand.u32 %v597, 4294901760
    %599 = vmatpush1.msra.mxu0 %v598
    %600 = vmatprep.subr.mxu0 0.0
    %v601 = vand.u32 %v62, 4294901760
    %v602 = vsub.f32 %v62, %v601
    %v603 = vand.u32 %v602, 4294901760
    %604 = vmatpush1.msra.mxu0 %v603
    %605 = vmatprep.subr.mxu0 0.0
    %v606 = vand.u32 %v63, 4294901760
    %v607 = vsub.f32 %v63, %v606
    %v608 = vand.u32 %v607, 4294901760
    %609 = vmatpush1.msra.mxu0 %v608
    %610 = vmatprep.subr.mxu0 0.0
    %611 = vmatpush1.msra.mxu0 0.0
    %612 = vmatprep.subr.mxu0 0.0
    %613 = vmatpush1.msra.mxu0 0.0
    %614 = vmatprep.subr.mxu0 0.0
    %615 = vmatpush1.msra.mxu0 0.0
    %616 = vmatprep.subr.mxu0 0.0
    %617 = vmatpush1.msra.mxu0 0.0
    %618 = vmatprep.subr.mxu0 0.0
    %619 = vmatpush1.msra.mxu0 0.0
    %620 = vmatprep.subr.mxu0 0.0
    %621 = vmatpush1.msra.mxu0 0.0
    %622 = vmatprep.subr.mxu0 0.0
    %623 = vmatpush1.msra.mxu0 0.0
    %624 = vmatprep.subr.mxu0 0.0
    %625 = vmatpush1.msra.mxu0 0.0
    %626 = vmatprep.subr.mxu0 0.0
    %627 = vmatpush1.msra.mxu0 0.0
    %628 = vmatprep.subr.mxu0 0.0
    %629 = vmatpush1.msra.mxu0 0.0
    %630 = vmatprep.subr.mxu0 0.0
    %631 = vmatpush1.msra.mxu0 0.0
    %632 = vmatprep.subr.mxu0 0.0
    %633 = vmatpush1.msra.mxu0 0.0
    %634 = vmatprep.subr.mxu0 0.0
    %635 = vmatpush1.msra.mxu0 0.0
    %636 = vmatprep.subr.mxu0 0.0
    %637 = vmatpush1.msra.mxu0 0.0
    %638 = vmatprep.subr.mxu0 0.0
    %639 = vmatpush1.msra.mxu0 0.0
    %640 = vmatprep.subr.mxu0 0.0
    %641 = vmatpush1.msra.mxu0 0.0
    %642 = vmatprep.mubr.f32.mxu0 0.0
    %v643 = vand.u32 %v46, 4294901760
    %644 = vmatmul.mubr.f32.gmra.mrb[0].mxu0 %v643
    %v645 = vpop.f32.mrb[0].mxu0
    %v646 = vadd.f32 %v519, %v645
    %v647 = vpop.f32.mrb[0].mxu0
    %648 = vmatprep.mubr.f32.mxu0 0.0
    %v649 = vand.u32 %v47, 4294901760
    %650 = vmatmul.mubr.f32.gmra.mrb[0].mxu0 %v649
    %v651 = vpop.f32.mrb[0].mxu0
    %v652 = vadd.f32 %v527, %v651
    %v653 = vpop.f32.mrb[0].mxu0
    %654 = vdwg.mxu0
    %655 = vmatprep.subr.mxu0 0.0
    %v656 = vand.u32 %v48, 4294901760
    %657 = vmatpush1.msra.mxu0 %v656
    %658 = vmatprep.subr.mxu0 0.0
    %v659 = vand.u32 %v49, 4294901760
    %660 = vmatpush1.msra.mxu0 %v659
    %661 = vmatprep.subr.mxu0 0.0
    %v662 = vand.u32 %v50, 4294901760
    %663 = vmatpush1.msra.mxu0 %v662
    %664 = vmatprep.subr.mxu0 0.0
    %v665 = vand.u32 %v51, 4294901760
    %666 = vmatpush1.msra.mxu0 %v665
    %667 = vmatprep.subr.mxu0 0.0
    %v668 = vand.u32 %v52, 4294901760
    %669 = vmatpush1.msra.mxu0 %v668
    %670 = vmatprep.subr.mxu0 0.0
    %v671 = vand.u32 %v53, 4294901760
    %672 = vmatpush1.msra.mxu0 %v671
    %673 = vmatprep.subr.mxu0 0.0
    %v674 = vand.u32 %v54, 4294901760
    %675 = vmatpush1.msra.mxu0 %v674
    %676 = vmatprep.subr.mxu0 0.0
    %v677 = vand.u32 %v55, 4294901760
    %678 = vmatpush1.msra.mxu0 %v677
    %679 = vmatprep.subr.mxu0 0.0
    %v680 = vand.u32 %v56, 4294901760
    %681 = vmatpush1.msra.mxu0 %v680
    %682 = vmatprep.subr.mxu0 0.0
    %v683 = vand.u32 %v57, 4294901760
    %684 = vmatpush1.msra.mxu0 %v683
    %685 = vmatprep.subr.mxu0 0.0
    %v686 = vand.u32 %v58, 4294901760
    %687 = vmatpush1.msra.mxu0 %v686
    %688 = vmatprep.subr.mxu0 0.0
    %v689 = vand.u32 %v59, 4294901760
    %690 = vmatpush1.msra.mxu0 %v689
    %691 = vmatprep.subr.mxu0 0.0
    %v692 = vand.u32 %v60, 4294901760
    %693 = vmatpush1.msra.mxu0 %v692
    %694 = vmatprep.subr.mxu0 0.0
    %v695 = vand.u32 %v61, 4294901760
    %696 = vmatpush1.msra.mxu0 %v695
    %697 = vmatprep.subr.mxu0 0.0
    %v698 = vand.u32 %v62, 4294901760
    %699 = vmatpush1.msra.mxu0 %v698
    %700 = vmatprep.subr.mxu0 0.0
    %v701 = vand.u32 %v63, 4294901760
    %702 = vmatpush1.msra.mxu0 %v701
    %703 = vmatprep.subr.mxu0 0.0
    %704 = vmatpush1.msra.mxu0 0.0
    %705 = vmatprep.subr.mxu0 0.0
    %706 = vmatpush1.msra.mxu0 0.0
    %707 = vmatprep.subr.mxu0 0.0
    %708 = vmatpush1.msra.mxu0 0.0
    %709 = vmatprep.subr.mxu0 0.0
    %710 = vmatpush1.msra.mxu0 0.0
    %711 = vmatprep.subr.mxu0 0.0
    %712 = vmatpush1.msra.mxu0 0.0
    %713 = vmatprep.subr.mxu0 0.0
    %714 = vmatpush1.msra.mxu0 0.0
    %715 = vmatprep.subr.mxu0 0.0
    %716 = vmatpush1.msra.mxu0 0.0
    %717 = vmatprep.subr.mxu0 0.0
    %718 = vmatpush1.msra.mxu0 0.0
    %719 = vmatprep.subr.mxu0 0.0
    %720 = vmatpush1.msra.mxu0 0.0
    %721 = vmatprep.subr.mxu0 0.0
    %722 = vmatpush1.msra.mxu0 0.0
    %723 = vmatprep.subr.mxu0 0.0
    %724 = vmatpush1.msra.mxu0 0.0
    %725 = vmatprep.subr.mxu0 0.0
    %726 = vmatpush1.msra.mxu0 0.0
    %727 = vmatprep.subr.mxu0 0.0
    %728 = vmatpush1.msra.mxu0 0.0
    %729 = vmatprep.subr.mxu0 0.0
    %730 = vmatpush1.msra.mxu0 0.0
    %731 = vmatprep.subr.mxu0 0.0
    %732 = vmatpush1.msra.mxu0 0.0
    %733 = vmatprep.subr.mxu0 0.0
    %734 = vmatpush1.msra.mxu0 0.0
    %735 = vmatprep.mubr.f32.mxu0 0.0
    %v736 = vand.u32 %v46, 4294901760
    %737 = vmatmul.mubr.f32.gmra.mrb[0].mxu0 %v736
    %v738 = vpop.f32.mrb[0].mxu0
    %v739 = vadd.f32 %v646, %v738
    %v740 = vpop.f32.mrb[0].mxu0
    %741 = vmatprep.mubr.f32.mxu0 0.0
    %v742 = vand.u32 %v47, 4294901760
    %743 = vmatmul.mubr.f32.gmra.mrb[0].mxu0 %v742
    %v744 = vpop.f32.mrb[0].mxu0
    %v745 = vadd.f32 %v652, %v744
    %v746 = vpop.f32.mrb[0].mxu0
    %747 = vdwg.mxu0
    %v748 = vsub.f32 %v46, %v739
    %v749 = vsub.f32 %v47, %v745
    %v750 = vmul.f32 %v748, %v748
    %v751 = vmul.f32 %v749, %v749
    %752 = vmatprep.subr.mxu0 0.0
    %v753 = vand.u32 %v48, 4294901760
    %754 = vmatpush1.msra.mxu0 %v753
    %755 = vmatprep.subr.mxu0 0.0
    %v756 = vand.u32 %v49, 4294901760
    %757 = vmatpush1.msra.mxu0 %v756
    %758 = vmatprep.subr.mxu0 0.0
    %v759 = vand.u32 %v50, 4294901760
    %760 = vmatpush1.msra.mxu0 %v759
    %761 = vmatprep.subr.mxu0 0.0
    %v762 = vand.u32 %v51, 4294901760
    %763 = vmatpush1.msra.mxu0 %v762
    %764 = vmatprep.subr.mxu0 0.0
    %v765 = vand.u32 %v52, 4294901760
    %766 = vmatpush1.msra.mxu0 %v765
    %767 = vmatprep.subr.mxu0 0.0
    %v768 = vand.u32 %v53, 4294901760
    %769 = vmatpush1.msra.mxu0 %v768
    %770 = vmatprep.subr.mxu0 0.0
    %v771 = vand.u32 %v54, 4294901760
    %772 = vmatpush1.msra.mxu0 %v771
    %773 = vmatprep.subr.mxu0 0.0
    %v774 = vand.u32 %v55, 4294901760
    %775 = vmatpush1.msra.mxu0 %v774
    %776 = vmatprep.subr.mxu0 0.0
    %v777 = vand.u32 %v56, 4294901760
    %778 = vmatpush1.msra.mxu0 %v777
    %779 = vmatprep.subr.mxu0 0.0
    %v780 = vand.u32 %v57, 4294901760
    %781 = vmatpush1.msra.mxu0 %v780
    %782 = vmatprep.subr.mxu0 0.0
    %v783 = vand.u32 %v58, 4294901760
    %784 = vmatpush1.msra.mxu0 %v783
    %785 = vmatprep.subr.mxu0 0.0
    %v786 = vand.u32 %v59, 4294901760
    %787 = vmatpush1.msra.mxu0 %v786
    %788 = vmatprep.subr.mxu0 0.0
    %v789 = vand.u32 %v60, 4294901760
    %790 = vmatpush1.msra.mxu0 %v789
    %791 = vmatprep.subr.mxu0 0.0
    %v792 = vand.u32 %v61, 4294901760
    %793 = vmatpush1.msra.mxu0 %v792
    %794 = vmatprep.subr.mxu0 0.0
    %v795 = vand.u32 %v62, 4294901760
    %796 = vmatpush1.msra.mxu0 %v795
    %797 = vmatprep.subr.mxu0 0.0
    %v798 = vand.u32 %v63, 4294901760
    %799 = vmatpush1.msra.mxu0 %v798
    %800 = vmatprep.subr.mxu0 0.0
    %801 = vmatpush1.msra.mxu0 0.0
    %802 = vmatprep.subr.mxu0 0.0
    %803 = vmatpush1.msra.mxu0 0.0
    %804 = vmatprep.subr.mxu0 0.0
    %805 = vmatpush1.msra.mxu0 0.0
    %806 = vmatprep.subr.mxu0 0.0
    %807 = vmatpush1.msra.mxu0 0.0
    %808 = vmatprep.subr.mxu0 0.0
    %809 = vmatpush1.msra.mxu0 0.0
    %810 = vmatprep.subr.mxu0 0.0
    %811 = vmatpush1.msra.mxu0 0.0
    %812 = vmatprep.subr.mxu0 0.0
    %813 = vmatpush1.msra.mxu0 0.0
    %814 = vmatprep.subr.mxu0 0.0
    %815 = vmatpush1.msra.mxu0 0.0
    %816 = vmatprep.subr.mxu0 0.0
    %817 = vmatpush1.msra.mxu0 0.0
    %818 = vmatprep.subr.mxu0 0.0
    %819 = vmatpush1.msra.mxu0 0.0
    %820 = vmatprep.subr.mxu0 0.0
    %821 = vmatpush1.msra.mxu0 0.0
    %822 = vmatprep.subr.mxu0 0.0
    %823 = vmatpush1.msra.mxu0 0.0
    %824 = vmatprep.subr.mxu0 0.0
    %825 = vmatpush1.msra.mxu0 0.0
    %826 = vmatprep.subr.mxu0 0.0
    %827 = vmatpush1.msra.mxu0 0.0
    %828 = vmatprep.subr.mxu0 0.0
    %829 = vmatpush1.msra.mxu0 0.0
    %830 = vmatprep.subr.mxu0 0.0
    %831 = vmatpush1.msra.mxu0 0.0
    %832 = vmatprep.mubr.f32.mxu0 0.0
    %v833 = vand.u32 %v750, 4294901760
    %v834 = vsub.f32 %v750, %v833
    %v835 = vand.u32 %v834, 4294901760
    %v836 = vsub.f32 %v834, %v835
    %v837 = vand.u32 %v836, 4294901760
    %838 = vmatmul.mubr.f32.gmra.mrb[0].mxu0 %v837
    %v839 = vpop.f32.mrb[0].mxu0
    %v840 = vadd.f32 1e-05, %v839
    %v841 = vpop.f32.mrb[0].mxu0
    %842 = vmatprep.mubr.f32.mxu0 0.0
    %v843 = vand.u32 %v751, 4294901760
    %v844 = vsub.f32 %v751, %v843
    %v845 = vand.u32 %v844, 4294901760
    %v846 = vsub.f32 %v844, %v845
    %v847 = vand.u32 %v846, 4294901760
    %848 = vmatmul.mubr.f32.gmra.mrb[0].mxu0 %v847
    %v849 = vpop.f32.mrb[0].mxu0
    %v850 = vadd.f32 1e-05, %v849
    %v851 = vpop.f32.mrb[0].mxu0
    %852 = vdwg.mxu0
    %853 = vmatprep.subr.mxu0 0.0
    %v854 = vand.u32 %v48, 4294901760
    %v855 = vsub.f32 %v48, %v854
    %v856 = vand.u32 %v855, 4294901760
    %v857 = vsub.f32 %v855, %v856
    %v858 = vand.u32 %v857, 4294901760
    %859 = vmatpush1.msra.mxu0 %v858
    %860 = vmatprep.subr.mxu0 0.0
    %v861 = vand.u32 %v49, 4294901760
    %v862 = vsub.f32 %v49, %v861
    %v863 = vand.u32 %v862, 4294901760
    %v864 = vsub.f32 %v862, %v863
    %v865 = vand.u32 %v864, 4294901760
    %866 = vmatpush1.msra.mxu0 %v865
    %867 = vmatprep.subr.mxu0 0.0
    %v868 = vand.u32 %v50, 4294901760
    %v869 = vsub.f32 %v50, %v868
    %v870 = vand.u32 %v869, 4294901760
    %v871 = vsub.f32 %v869, %v870
    %v872 = vand.u32 %v871, 4294901760
    %873 = vmatpush1.msra.mxu0 %v872
    %874 = vmatprep.subr.mxu0 0.0
    %v875 = vand.u32 %v51, 4294901760
    %v876 = vsub.f32 %v51, %v875
    %v877 = vand.u32 %v876, 4294901760
    %v878 = vsub.f32 %v876, %v877
    %v879 = vand.u32 %v878, 4294901760
    %880 = vmatpush1.msra.mxu0 %v879
    %881 = vmatprep.subr.mxu0 0.0
    %v882 = vand.u32 %v52, 4294901760
    %v883 = vsub.f32 %v52, %v882
    %v884 = vand.u32 %v883, 4294901760
    %v885 = vsub.f32 %v883, %v884
    %v886 = vand.u32 %v885, 4294901760
    %887 = vmatpush1.msra.mxu0 %v886
    %888 = vmatprep.subr.mxu0 0.0
    %v889 = vand.u32 %v53, 4294901760
    %v890 = vsub.f32 %v53, %v889
    %v891 = vand.u32 %v890, 4294901760
    %v892 = vsub.f32 %v890, %v891
    %v893 = vand.u32 %v892, 4294901760
    %894 = vmatpush1.msra.mxu0 %v893
    %895 = vmatprep.subr.mxu0 0.0
    %v896 = vand.u32 %v54, 4294901760
    %v897 = vsub.f32 %v54, %v896
    %v898 = vand.u32 %v897, 4294901760
    %v899 = vsub.f32 %v897, %v898
    %v900 = vand.u32 %v899, 4294901760
    %901 = vmatpush1.msra.mxu0 %v900
    %902 = vmatprep.subr.mxu0 0.0
    %v903 = vand.u32 %v55, 4294901760
    %v904 = vsub.f32 %v55, %v903
    %v905 = vand.u32 %v904, 4294901760
    %v906 = vsub.f32 %v904, %v905
    %v907 = vand.u32 %v906, 4294901760
    %908 = vmatpush1.msra.mxu0 %v907
    %909 = vmatprep.subr.mxu0 0.0
    %v910 = vand.u32 %v56, 4294901760
    %v911 = vsub.f32 %v56, %v910
    %v912 = vand.u32 %v911, 4294901760
    %v913 = vsub.f32 %v911, %v912
    %v914 = vand.u32 %v913, 4294901760
    %915 = vmatpush1.msra.mxu0 %v914
    %916 = vmatprep.subr.mxu0 0.0
    %v917 = vand.u32 %v57, 4294901760
    %v918 = vsub.f32 %v57, %v917
    %v919 = vand.u32 %v918, 4294901760
    %v920 = vsub.f32 %v918, %v919
    %v921 = vand.u32 %v920, 4294901760
    %922 = vmatpush1.msra.mxu0 %v921
    %923 = vmatprep.subr.mxu0 0.0
    %v924 = vand.u32 %v58, 4294901760
    %v925 = vsub.f32 %v58, %v924
    %v926 = vand.u32 %v925, 4294901760
    %v927 = vsub.f32 %v925, %v926
    %v928 = vand.u32 %v927, 4294901760
    %929 = vmatpush1.msra.mxu0 %v928
    %930 = vmatprep.subr.mxu0 0.0
    %v931 = vand.u32 %v59, 4294901760
    %v932 = vsub.f32 %v59, %v931
    %v933 = vand.u32 %v932, 4294901760
    %v934 = vsub.f32 %v932, %v933
    %v935 = vand.u32 %v934, 4294901760
    %936 = vmatpush1.msra.mxu0 %v935
    %937 = vmatprep.subr.mxu0 0.0
    %v938 = vand.u32 %v60, 4294901760
    %v939 = vsub.f32 %v60, %v938
    %v940 = vand.u32 %v939, 4294901760
    %v941 = vsub.f32 %v939, %v940
    %v942 = vand.u32 %v941, 4294901760
    %943 = vmatpush1.msra.mxu0 %v942
    %944 = vmatprep.subr.mxu0 0.0
    %v945 = vand.u32 %v61, 4294901760
    %v946 = vsub.f32 %v61, %v945
    %v947 = vand.u32 %v946, 4294901760
    %v948 = vsub.f32 %v946, %v947
    %v949 = vand.u32 %v948, 4294901760
    %950 = vmatpush1.msra.mxu0 %v949
    %951 = vmatprep.subr.mxu0 0.0
    %v952 = vand.u32 %v62, 4294901760
    %v953 = vsub.f32 %v62, %v952
    %v954 = vand.u32 %v953, 4294901760
    %v955 = vsub.f32 %v953, %v954
    %v956 = vand.u32 %v955, 4294901760
    %957 = vmatpush1.msra.mxu0 %v956
    %958 = vmatprep.subr.mxu0 0.0
    %v959 = vand.u32 %v63, 4294901760
    %v960 = vsub.f32 %v63, %v959
    %v961 = vand.u32 %v960, 4294901760
    %v962 = vsub.f32 %v960, %v961
    %v963 = vand.u32 %v962, 4294901760
    %964 = vmatpush1.msra.mxu0 %v963
    %965 = vmatprep.subr.mxu0 0.0
    %966 = vmatpush1.msra.mxu0 0.0
    %967 = vmatprep.subr.mxu0 0.0
    %968 = vmatpush1.msra.mxu0 0.0
    %969 = vmatprep.subr.mxu0 0.0
    %970 = vmatpush1.msra.mxu0 0.0
    %971 = vmatprep.subr.mxu0 0.0
    %972 = vmatpush1.msra.mxu0 0.0
    %973 = vmatprep.subr.mxu0 0.0
    %974 = vmatpush1.msra.mxu0 0.0
    %975 = vmatprep.subr.mxu0 0.0
    %976 = vmatpush1.msra.mxu0 0.0
    %977 = vmatprep.subr.mxu0 0.0
    %978 = vmatpush1.msra.mxu0 0.0
    %979 = vmatprep.subr.mxu0 0.0
    %980 = vmatpush1.msra.mxu0 0.0
    %981 = vmatprep.subr.mxu0 0.0
    %982 = vmatpush1.msra.mxu0 0.0
    %983 = vmatprep.subr.mxu0 0.0
    %984 = vmatpush1.msra.mxu0 0.0
    %985 = vmatprep.subr.mxu0 0.0
    %986 = vmatpush1.msra.mxu0 0.0
    %987 = vmatprep.subr.mxu0 0.0
    %988 = vmatpush1.msra.mxu0 0.0
    %989 = vmatprep.subr.mxu0 0.0
    %990 = vmatpush1.msra.mxu0 0.0
    %991 = vmatprep.subr.mxu0 0.0
    %992 = vmatpush1.msra.mxu0 0.0
    %993 = vmatprep.subr.mxu0 0.0
    %994 = vmatpush1.msra.mxu0 0.0
    %995 = vmatprep.subr.mxu0 0.0
    %996 = vmatpush1.msra.mxu0 0.0
    %997 = vmatprep.mubr.f32.mxu0 0.0
    %v998 = vand.u32 %v750, 4294901760
    %999 = vmatmul.mubr.f32.gmra.mrb[0].mxu0 %v998
    %v1000 = vpop.f32.mrb[0].mxu0
    %v1001 = vadd.f32 %v840, %v1000
    %v1002 = vpop.f32.mrb[0].mxu0
    %1003 = vmatprep.mubr.f32.mxu0 0.0
    %v1004 = vand.u32 %v751, 4294901760
    %1005 = vmatmul.mubr.f32.gmra.mrb[0].mxu0 %v1004
    %v1006 = vpop.f32.mrb[0].mxu0
    %v1007 = vadd.f32 %v850, %v1006
    %v1008 = vpop.f32.mrb[0].mxu0
    %1009 = vdwg.mxu0
    %1010 = vmatprep.subr.mxu0 0.0
    %v1011 = vand.u32 %v48, 4294901760
    %v1012 = vsub.f32 %v48, %v1011
    %1013 = vmatpush1.msra.mxu0 %v1012
    %1014 = vmatprep.subr.mxu0 0.0
    %v1015 = vand.u32 %v49, 4294901760
    %v1016 = vsub.f32 %v49, %v1015
    %1017 = vmatpush1.msra.mxu0 %v1016
    %1018 = vmatprep.subr.mxu0 0.0
    %v1019 = vand.u32 %v50, 4294901760
    %v1020 = vsub.f32 %v50, %v1019
    %1021 = vmatpush1.msra.mxu0 %v1020
    %1022 = vmatprep.subr.mxu0 0.0
    %v1023 = vand.u32 %v51, 4294901760
    %v1024 = vsub.f32 %v51, %v1023
    %1025 = vmatpush1.msra.mxu0 %v1024
    %1026 = vmatprep.subr.mxu0 0.0
    %v1027 = vand.u32 %v52, 4294901760
    %v1028 = vsub.f32 %v52, %v1027
    %1029 = vmatpush1.msra.mxu0 %v1028
    %1030 = vmatprep.subr.mxu0 0.0
    %v1031 = vand.u32 %v53, 4294901760
    %v1032 = vsub.f32 %v53, %v1031
    %1033 = vmatpush1.msra.mxu0 %v1032
    %1034 = vmatprep.subr.mxu0 0.0
    %v1035 = vand.u32 %v54, 4294901760
    %v1036 = vsub.f32 %v54, %v1035
    %1037 = vmatpush1.msra.mxu0 %v1036
    %1038 = vmatprep.subr.mxu0 0.0
    %v1039 = vand.u32 %v55, 4294901760
    %v1040 = vsub.f32 %v55, %v1039
    %1041 = vmatpush1.msra.mxu0 %v1040
    %1042 = vmatprep.subr.mxu0 0.0
    %v1043 = vand.u32 %v56, 4294901760
    %v1044 = vsub.f32 %v56, %v1043
    %1045 = vmatpush1.msra.mxu0 %v1044
    %1046 = vmatprep.subr.mxu0 0.0
    %v1047 = vand.u32 %v57, 4294901760
    %v1048 = vsub.f32 %v57, %v1047
    %1049 = vmatpush1.msra.mxu0 %v1048
    %1050 = vmatprep.subr.mxu0 0.0
    %v1051 = vand.u32 %v58, 4294901760
    %v1052 = vsub.f32 %v58, %v1051
    %1053 = vmatpush1.msra.mxu0 %v1052
    %1054 = vmatprep.subr.mxu0 0.0
    %v1055 = vand.u32 %v59, 4294901760
    %v1056 = vsub.f32 %v59, %v1055
    %1057 = vmatpush1.msra.mxu0 %v1056
    %1058 = vmatprep.subr.mxu0 0.0
    %v1059 = vand.u32 %v60, 4294901760
    %v1060 = vsub.f32 %v60, %v1059
    %1061 = vmatpush1.msra.mxu0 %v1060
    %1062 = vmatprep.subr.mxu0 0.0
    %v1063 = vand.u32 %v61, 4294901760
    %v1064 = vsub.f32 %v61, %v1063
    %1065 = vmatpush1.msra.mxu0 %v1064
    %1066 = vmatprep.subr.mxu0 0.0
    %v1067 = vand.u32 %v62, 4294901760
    %v1068 = vsub.f32 %v62, %v1067
    %1069 = vmatpush1.msra.mxu0 %v1068
    %1070 = vmatprep.subr.mxu0 0.0
    %v1071 = vand.u32 %v63, 4294901760
    %v1072 = vsub.f32 %v63, %v1071
    %1073 = vmatpush1.msra.mxu0 %v1072
    %1074 = vmatprep.subr.mxu0 0.0
    %1075 = vmatpush1.msra.mxu0 0.0
    %1076 = vmatprep.subr.mxu0 0.0
    %1077 = vmatpush1.msra.mxu0 0.0
    %1078 = vmatprep.subr.mxu0 0.0
    %1079 = vmatpush1.msra.mxu0 0.0
    %1080 = vmatprep.subr.mxu0 0.0
    %1081 = vmatpush1.msra.mxu0 0.0
    %1082 = vmatprep.subr.mxu0 0.0
    %1083 = vmatpush1.msra.mxu0 0.0
    %1084 = vmatprep.subr.mxu0 0.0
    %1085 = vmatpush1.msra.mxu0 0.0
    %1086 = vmatprep.subr.mxu0 0.0
    %1087 = vmatpush1.msra.mxu0 0.0
    %1088 = vmatprep.subr.mxu0 0.0
    %1089 = vmatpush1.msra.mxu0 0.0
    %1090 = vmatprep.subr.mxu0 0.0
    %1091 = vmatpush1.msra.mxu0 0.0
    %1092 = vmatprep.subr.mxu0 0.0
    %1093 = vmatpush1.msra.mxu0 0.0
    %1094 = vmatprep.subr.mxu0 0.0
    %1095 = vmatpush1.msra.mxu0 0.0
    %1096 = vmatprep.subr.mxu0 0.0
    %1097 = vmatpush1.msra.mxu0 0.0
    %1098 = vmatprep.subr.mxu0 0.0
    %1099 = vmatpush1.msra.mxu0 0.0
    %1100 = vmatprep.subr.mxu0 0.0
    %1101 = vmatpush1.msra.mxu0 0.0
    %1102 = vmatprep.subr.mxu0 0.0
    %1103 = vmatpush1.msra.mxu0 0.0
    %1104 = vmatprep.subr.mxu0 0.0
    %1105 = vmatpush1.msra.mxu0 0.0
    %1106 = vmatprep.mubr.f32.mxu0 0.0
    %v1107 = vand.u32 %v750, 4294901760
    %v1108 = vsub.f32 %v750, %v1107
    %1109 = vmatmul.mubr.f32.gmra.mrb[0].mxu0 %v1108
    %v1110 = vpop.f32.mrb[0].mxu0
    %v1111 = vadd.f32 %v1001, %v1110
    %v1112 = vpop.f32.mrb[0].mxu0
    %1113 = vmatprep.mubr.f32.mxu0 0.0
    %v1114 = vand.u32 %v751, 4294901760
    %v1115 = vsub.f32 %v751, %v1114
    %1116 = vmatmul.mubr.f32.gmra.mrb[0].mxu0 %v1115
    %v1117 = vpop.f32.mrb[0].mxu0
    %v1118 = vadd.f32 %v1007, %v1117
    %v1119 = vpop.f32.mrb[0].mxu0
    %1120 = vdwg.mxu0
    %1121 = vmatprep.subr.mxu0 0.0
    %v1122 = vand.u32 %v48, 4294901760
    %1123 = vmatpush1.msra.mxu0 %v1122
    %1124 = vmatprep.subr.mxu0 0.0
    %v1125 = vand.u32 %v49, 4294901760
    %1126 = vmatpush1.msra.mxu0 %v1125
    %1127 = vmatprep.subr.mxu0 0.0
    %v1128 = vand.u32 %v50, 4294901760
    %1129 = vmatpush1.msra.mxu0 %v1128
    %1130 = vmatprep.subr.mxu0 0.0
    %v1131 = vand.u32 %v51, 4294901760
    %1132 = vmatpush1.msra.mxu0 %v1131
    %1133 = vmatprep.subr.mxu0 0.0
    %v1134 = vand.u32 %v52, 4294901760
    %1135 = vmatpush1.msra.mxu0 %v1134
    %1136 = vmatprep.subr.mxu0 0.0
    %v1137 = vand.u32 %v53, 4294901760
    %1138 = vmatpush1.msra.mxu0 %v1137
    %1139 = vmatprep.subr.mxu0 0.0
    %v1140 = vand.u32 %v54, 4294901760
    %1141 = vmatpush1.msra.mxu0 %v1140
    %1142 = vmatprep.subr.mxu0 0.0
    %v1143 = vand.u32 %v55, 4294901760
    %1144 = vmatpush1.msra.mxu0 %v1143
    %1145 = vmatprep.subr.mxu0 0.0
    %v1146 = vand.u32 %v56, 4294901760
    %1147 = vmatpush1.msra.mxu0 %v1146
    %1148 = vmatprep.subr.mxu0 0.0
    %v1149 = vand.u32 %v57, 4294901760
    %1150 = vmatpush1.msra.mxu0 %v1149
    %1151 = vmatprep.subr.mxu0 0.0
    %v1152 = vand.u32 %v58, 4294901760
    %1153 = vmatpush1.msra.mxu0 %v1152
    %1154 = vmatprep.subr.mxu0 0.0
    %v1155 = vand.u32 %v59, 4294901760
    %1156 = vmatpush1.msra.mxu0 %v1155
    %1157 = vmatprep.subr.mxu0 0.0
    %v1158 = vand.u32 %v60, 4294901760
    %1159 = vmatpush1.msra.mxu0 %v1158
    %1160 = vmatprep.subr.mxu0 0.0
    %v1161 = vand.u32 %v61, 4294901760
    %1162 = vmatpush1.msra.mxu0 %v1161
    %1163 = vmatprep.subr.mxu0 0.0
    %v1164 = vand.u32 %v62, 4294901760
    %1165 = vmatpush1.msra.mxu0 %v1164
    %1166 = vmatprep.subr.mxu0 0.0
    %v1167 = vand.u32 %v63, 4294901760
    %1168 = vmatpush1.msra.mxu0 %v1167
    %1169 = vmatprep.subr.mxu0 0.0
    %1170 = vmatpush1.msra.mxu0 0.0
    %1171 = vmatprep.subr.mxu0 0.0
    %1172 = vmatpush1.msra.mxu0 0.0
    %1173 = vmatprep.subr.mxu0 0.0
    %1174 = vmatpush1.msra.mxu0 0.0
    %1175 = vmatprep.subr.mxu0 0.0
    %1176 = vmatpush1.msra.mxu0 0.0
    %1177 = vmatprep.subr.mxu0 0.0
    %1178 = vmatpush1.msra.mxu0 0.0
    %1179 = vmatprep.subr.mxu0 0.0
    %1180 = vmatpush1.msra.mxu0 0.0
    %1181 = vmatprep.subr.mxu0 0.0
    %1182 = vmatpush1.msra.mxu0 0.0
    %1183 = vmatprep.subr.mxu0 0.0
    %1184 = vmatpush1.msra.mxu0 0.0
    %1185 = vmatprep.subr.mxu0 0.0
    %1186 = vmatpush1.msra.mxu0 0.0
    %1187 = vmatprep.subr.mxu0 0.0
    %1188 = vmatpush1.msra.mxu0 0.0
    %1189 = vmatprep.subr.mxu0 0.0
    %1190 = vmatpush1.msra.mxu0 0.0
    %1191 = vmatprep.subr.mxu0 0.0
    %1192 = vmatpush1.msra.mxu0 0.0
    %1193 = vmatprep.subr.mxu0 0.0
    %1194 = vmatpush1.msra.mxu0 0.0
    %1195 = vmatprep.subr.mxu0 0.0
    %1196 = vmatpush1.msra.mxu0 0.0
    %1197 = vmatprep.subr.mxu0 0.0
    %1198 = vmatpush1.msra.mxu0 0.0
    %1199 = vmatprep.subr.mxu0 0.0
    %1200 = vmatpush1.msra.mxu0 0.0
    %1201 = vmatprep.mubr.f32.mxu0 0.0
    %v1202 = vand.u32 %v750, 4294901760
    %v1203 = vsub.f32 %v750, %v1202
    %v1204 = vand.u32 %v1203, 4294901760
    %1205 = vmatmul.mubr.f32.gmra.mrb[0].mxu0 %v1204
    %v1206 = vpop.f32.mrb[0].mxu0
    %v1207 = vadd.f32 %v1111, %v1206
    %v1208 = vpop.f32.mrb[0].mxu0
    %1209 = vmatprep.mubr.f32.mxu0 0.0
    %v1210 = vand.u32 %v751, 4294901760
    %v1211 = vsub.f32 %v751, %v1210
    %v1212 = vand.u32 %v1211, 4294901760
    %1213 = vmatmul.mubr.f32.gmra.mrb[0].mxu0 %v1212
    %v1214 = vpop.f32.mrb[0].mxu0
    %v1215 = vadd.f32 %v1118, %v1214
    %v1216 = vpop.f32.mrb[0].mxu0
    %1217 = vdwg.mxu0
    %1218 = vmatprep.subr.mxu0 0.0
    %v1219 = vand.u32 %v48, 4294901760
    %v1220 = vsub.f32 %v48, %v1219
    %v1221 = vand.u32 %v1220, 4294901760
    %1222 = vmatpush1.msra.mxu0 %v1221
    %1223 = vmatprep.subr.mxu0 0.0
    %v1224 = vand.u32 %v49, 4294901760
    %v1225 = vsub.f32 %v49, %v1224
    %v1226 = vand.u32 %v1225, 4294901760
    %1227 = vmatpush1.msra.mxu0 %v1226
    %1228 = vmatprep.subr.mxu0 0.0
    %v1229 = vand.u32 %v50, 4294901760
    %v1230 = vsub.f32 %v50, %v1229
    %v1231 = vand.u32 %v1230, 4294901760
    %1232 = vmatpush1.msra.mxu0 %v1231
    %1233 = vmatprep.subr.mxu0 0.0
    %v1234 = vand.u32 %v51, 4294901760
    %v1235 = vsub.f32 %v51, %v1234
    %v1236 = vand.u32 %v1235, 4294901760
    %1237 = vmatpush1.msra.mxu0 %v1236
    %1238 = vmatprep.subr.mxu0 0.0
    %v1239 = vand.u32 %v52, 4294901760
    %v1240 = vsub.f32 %v52, %v1239
    %v1241 = vand.u32 %v1240, 4294901760
    %1242 = vmatpush1.msra.mxu0 %v1241
    %1243 = vmatprep.subr.mxu0 0.0
    %v1244 = vand.u32 %v53, 4294901760
    %v1245 = vsub.f32 %v53, %v1244
    %v1246 = vand.u32 %v1245, 4294901760
    %1247 = vmatpush1.msra.mxu0 %v1246
    %1248 = vmatprep.subr.mxu0 0.0
    %v1249 = vand.u32 %v54, 4294901760
    %v1250 = vsub.f32 %v54, %v1249
    %v1251 = vand.u32 %v1250, 4294901760
    %1252 = vmatpush1.msra.mxu0 %v1251
    %1253 = vmatprep.subr.mxu0 0.0
    %v1254 = vand.u32 %v55, 4294901760
    %v1255 = vsub.f32 %v55, %v1254
    %v1256 = vand.u32 %v1255, 4294901760
    %1257 = vmatpush1.msra.mxu0 %v1256
    %1258 = vmatprep.subr.mxu0 0.0
    %v1259 = vand.u32 %v56, 4294901760
    %v1260 = vsub.f32 %v56, %v1259
    %v1261 = vand.u32 %v1260, 4294901760
    %1262 = vmatpush1.msra.mxu0 %v1261
    %1263 = vmatprep.subr.mxu0 0.0
    %v1264 = vand.u32 %v57, 4294901760
    %v1265 = vsub.f32 %v57, %v1264
    %v1266 = vand.u32 %v1265, 4294901760
    %1267 = vmatpush1.msra.mxu0 %v1266
    %1268 = vmatprep.subr.mxu0 0.0
    %v1269 = vand.u32 %v58, 4294901760
    %v1270 = vsub.f32 %v58, %v1269
    %v1271 = vand.u32 %v1270, 4294901760
    %1272 = vmatpush1.msra.mxu0 %v1271
    %1273 = vmatprep.subr.mxu0 0.0
    %v1274 = vand.u32 %v59, 4294901760
    %v1275 = vsub.f32 %v59, %v1274
    %v1276 = vand.u32 %v1275, 4294901760
    %1277 = vmatpush1.msra.mxu0 %v1276
    %1278 = vmatprep.subr.mxu0 0.0
    %v1279 = vand.u32 %v60, 4294901760
    %v1280 = vsub.f32 %v60, %v1279
    %v1281 = vand.u32 %v1280, 4294901760
    %1282 = vmatpush1.msra.mxu0 %v1281
    %1283 = vmatprep.subr.mxu0 0.0
    %v1284 = vand.u32 %v61, 4294901760
    %v1285 = vsub.f32 %v61, %v1284
    %v1286 = vand.u32 %v1285, 4294901760
    %1287 = vmatpush1.msra.mxu0 %v1286
    %1288 = vmatprep.subr.mxu0 0.0
    %v1289 = vand.u32 %v62, 4294901760
    %v1290 = vsub.f32 %v62, %v1289
    %v1291 = vand.u32 %v1290, 4294901760
    %1292 = vmatpush1.msra.mxu0 %v1291
    %1293 = vmatprep.subr.mxu0 0.0
    %v1294 = vand.u32 %v63, 4294901760
    %v1295 = vsub.f32 %v63, %v1294
    %v1296 = vand.u32 %v1295, 4294901760
    %1297 = vmatpush1.msra.mxu0 %v1296
    %1298 = vmatprep.subr.mxu0 0.0
    %1299 = vmatpush1.msra.mxu0 0.0
    %1300 = vmatprep.subr.mxu0 0.0
    %1301 = vmatpush1.msra.mxu0 0.0
    %1302 = vmatprep.subr.mxu0 0.0
    %1303 = vmatpush1.msra.mxu0 0.0
    %1304 = vmatprep.subr.mxu0 0.0
    %1305 = vmatpush1.msra.mxu0 0.0
    %1306 = vmatprep.subr.mxu0 0.0
    %1307 = vmatpush1.msra.mxu0 0.0
    %1308 = vmatprep.subr.mxu0 0.0
    %1309 = vmatpush1.msra.mxu0 0.0
    %1310 = vmatprep.subr.mxu0 0.0
    %1311 = vmatpush1.msra.mxu0 0.0
    %1312 = vmatprep.subr.mxu0 0.0
    %1313 = vmatpush1.msra.mxu0 0.0
    %1314 = vmatprep.subr.mxu0 0.0
    %1315 = vmatpush1.msra.mxu0 0.0
    %1316 = vmatprep.subr.mxu0 0.0
    %1317 = vmatpush1.msra.mxu0 0.0
    %1318 = vmatprep.subr.mxu0 0.0
    %1319 = vmatpush1.msra.mxu0 0.0
    %1320 = vmatprep.subr.mxu0 0.0
    %1321 = vmatpush1.msra.mxu0 0.0
    %1322 = vmatprep.subr.mxu0 0.0
    %1323 = vmatpush1.msra.mxu0 0.0
    %1324 = vmatprep.subr.mxu0 0.0
    %1325 = vmatpush1.msra.mxu0 0.0
    %1326 = vmatprep.subr.mxu0 0.0
    %1327 = vmatpush1.msra.mxu0 0.0
    %1328 = vmatprep.subr.mxu0 0.0
    %1329 = vmatpush1.msra.mxu0 0.0
    %1330 = vmatprep.mubr.f32.mxu0 0.0
    %v1331 = vand.u32 %v750, 4294901760
    %1332 = vmatmul.mubr.f32.gmra.mrb[0].mxu0 %v1331
    %v1333 = vpop.f32.mrb[0].mxu0
    %v1334 = vadd.f32 %v1207, %v1333
    %v1335 = vpop.f32.mrb[0].mxu0
    %1336 = vmatprep.mubr.f32.mxu0 0.0
    %v1337 = vand.u32 %v751, 4294901760
    %1338 = vmatmul.mubr.f32.gmra.mrb[0].mxu0 %v1337
    %v1339 = vpop.f32.mrb[0].mxu0
    %v1340 = vadd.f32 %v1215, %v1339
    %v1341 = vpop.f32.mrb[0].mxu0
    %1342 = vdwg.mxu0
    %1343 = vmatprep.subr.mxu0 0.0
    %v1344 = vand.u32 %v48, 4294901760
    %1345 = vmatpush1.msra.mxu0 %v1344
    %1346 = vmatprep.subr.mxu0 0.0
    %v1347 = vand.u32 %v49, 4294901760
    %1348 = vmatpush1.msra.mxu0 %v1347
    %1349 = vmatprep.subr.mxu0 0.0
    %v1350 = vand.u32 %v50, 4294901760
    %1351 = vmatpush1.msra.mxu0 %v1350
    %1352 = vmatprep.subr.mxu0 0.0
    %v1353 = vand.u32 %v51, 4294901760
    %1354 = vmatpush1.msra.mxu0 %v1353
    %1355 = vmatprep.subr.mxu0 0.0
    %v1356 = vand.u32 %v52, 4294901760
    %1357 = vmatpush1.msra.mxu0 %v1356
    %1358 = vmatprep.subr.mxu0 0.0
    %v1359 = vand.u32 %v53, 4294901760
    %1360 = vmatpush1.msra.mxu0 %v1359
    %1361 = vmatprep.subr.mxu0 0.0
    %v1362 = vand.u32 %v54, 4294901760
    %1363 = vmatpush1.msra.mxu0 %v1362
    %1364 = vmatprep.subr.mxu0 0.0
    %v1365 = vand.u32 %v55, 4294901760
    %1366 = vmatpush1.msra.mxu0 %v1365
    %1367 = vmatprep.subr.mxu0 0.0
    %v1368 = vand.u32 %v56, 4294901760
    %1369 = vmatpush1.msra.mxu0 %v1368
    %1370 = vmatprep.subr.mxu0 0.0
    %v1371 = vand.u32 %v57, 4294901760
    %1372 = vmatpush1.msra.mxu0 %v1371
    %1373 = vmatprep.subr.mxu0 0.0
    %v1374 = vand.u32 %v58, 4294901760
    %1375 = vmatpush1.msra.mxu0 %v1374
    %1376 = vmatprep.subr.mxu0 0.0
    %v1377 = vand.u32 %v59, 4294901760
    %1378 = vmatpush1.msra.mxu0 %v1377
    %1379 = vmatprep.subr.mxu0 0.0
    %v1380 = vand.u32 %v60, 4294901760
    %1381 = vmatpush1.msra.mxu0 %v1380
    %1382 = vmatprep.subr.mxu0 0.0
    %v1383 = vand.u32 %v61, 4294901760
    %1384 = vmatpush1.msra.mxu0 %v1383
    %1385 = vmatprep.subr.mxu0 0.0
    %v1386 = vand.u32 %v62, 4294901760
    %1387 = vmatpush1.msra.mxu0 %v1386
    %1388 = vmatprep.subr.mxu0 0.0
    %v1389 = vand.u32 %v63, 4294901760
    %1390 = vmatpush1.msra.mxu0 %v1389
    %1391 = vmatprep.subr.mxu0 0.0
    %1392 = vmatpush1.msra.mxu0 0.0
    %1393 = vmatprep.subr.mxu0 0.0
    %1394 = vmatpush1.msra.mxu0 0.0
    %1395 = vmatprep.subr.mxu0 0.0
    %1396 = vmatpush1.msra.mxu0 0.0
    %1397 = vmatprep.subr.mxu0 0.0
    %1398 = vmatpush1.msra.mxu0 0.0
    %1399 = vmatprep.subr.mxu0 0.0
    %1400 = vmatpush1.msra.mxu0 0.0
    %1401 = vmatprep.subr.mxu0 0.0
    %1402 = vmatpush1.msra.mxu0 0.0
    %1403 = vmatprep.subr.mxu0 0.0
    %1404 = vmatpush1.msra.mxu0 0.0
    %1405 = vmatprep.subr.mxu0 0.0
    %1406 = vmatpush1.msra.mxu0 0.0
    %1407 = vmatprep.subr.mxu0 0.0
    %1408 = vmatpush1.msra.mxu0 0.0
    %1409 = vmatprep.subr.mxu0 0.0
    %1410 = vmatpush1.msra.mxu0 0.0
    %1411 = vmatprep.subr.mxu0 0.0
    %1412 = vmatpush1.msra.mxu0 0.0
    %1413 = vmatprep.subr.mxu0 0.0
    %1414 = vmatpush1.msra.mxu0 0.0
    %1415 = vmatprep.subr.mxu0 0.0
    %1416 = vmatpush1.msra.mxu0 0.0
    %1417 = vmatprep.subr.mxu0 0.0
    %1418 = vmatpush1.msra.mxu0 0.0
    %1419 = vmatprep.subr.mxu0 0.0
    %1420 = vmatpush1.msra.mxu0 0.0
    %1421 = vmatprep.subr.mxu0 0.0
    %1422 = vmatpush1.msra.mxu0 0.0
    %1423 = vmatprep.mubr.f32.mxu0 0.0
    %v1424 = vand.u32 %v750, 4294901760
    %1425 = vmatmul.mubr.f32.gmra.mrb[0].mxu0 %v1424
    %v1426 = vpop.f32.mrb[0].mxu0
    %v1427 = vadd.f32 %v1334, %v1426
    %v1428 = vpop.f32.mrb[0].mxu0
    %1429 = vmatprep.mubr.f32.mxu0 0.0
    %v1430 = vand.u32 %v751, 4294901760
    %1431 = vmatmul.mubr.f32.gmra.mrb[0].mxu0 %v1430
    %v1432 = vpop.f32.mrb[0].mxu0
    %v1433 = vadd.f32 %v1340, %v1432
    %v1434 = vpop.f32.mrb[0].mxu0
    %1435 = vdwg.mxu0
    %v1436 = vrsqrt.pop %v1427
    %v1437 = vrsqrt.pop %v1433
    %v1438 = vmul.f32 %v748, %v1436
    %v1439 = vmul.f32 %v749, %v1437
    %v1440 = vld [vmem:[%s1] sm:$0x1]
    %v1442 = vlaneseq
    %v1443 = vshrl.u32 %v1442, 7
    %v1444 = vsub.s32 0, %v1443
    %v1445 = vrot.slane %v1440, %v1444
    %v1447 = vmul.f32 %v1438, %v1445
    %v1448 = vmul.f32 %v1439, %v1445
    %v1449 = vld [vmem:[%s2] sm:$0x1]
    %v1451 = vlaneseq
    %v1452 = vshrl.u32 %v1451, 7
    %v1453 = vsub.s32 0, %v1452
    %v1454 = vrot.slane %v1449, %v1453
    %v1456 = vadd.f32 %v1447, %v1454
    %v1457 = vadd.f32 %v1448, %v1454
    %1458 = vst [vmem:[#allocation7] sm:$0xff] %v1456
    %1459 = vst [vmem:[#allocation7 + $0x8] sm:$0xff] %v1457
    // Predicated region
    $region26: #{tpu_custom_call.1} parent=1 // pred_check
      _
    $region27: #{tpu_custom_call.1} parent=1 // pred_check_branch
      %1461 = sbr.rel (0) target = $region29
    $region28: #{tpu_custom_call.1} parent=1 // pred_region
      %s1463 = ssub.s32 256, 64
      %1464 = vsyncadd [#allocation4], %s1463
      %s1465 = sshll.u32 [#allocation7], 4
      %s1466 = int_to_ptr.vmem [resolvable:$true] %s1465
      %1471 = dma.vmem_to_hbm [thread:$0]  %s1466, 64, %s4, [#allocation4], 64, 64, 4
    $region29: #{tpu_custom_call.1} parent=1 // pred_fallthru
      _
    // Predicated region
    $region30: #{tpu_custom_call.1} parent=1 // pred_check
      _
    $region31: #{tpu_custom_call.1} parent=1 // pred_check_branch
      %1473 = sbr.rel (0) target = $region33
    $region32: #{tpu_custom_call.1} parent=1 // pred_region
      %1474 = dma.done [#allocation4], 256
    $region33: #{tpu_custom_call.1} parent=1 // pred_fallthru
      _
    %1475 = vsyncpa [#allocation3], 1
    %1476 = vsyncpa [#allocation6], 1
    %1477 = vsyncpa [#allocation4], 1

</llo_original>
